<compile_context>
chip_gen: v5e
topology: v5e:2x2
jax: 0.10.0
libtpu: 0.0.40
codegen_flags: <defaults>
</compile_context>

<pallas_src>
import math
import jax
import jax.numpy as jnp
from jax.experimental import pallas as pl
from jax.experimental.pallas import tpu as pltpu

# ---------------- configuration (small, shape-consistent) ----------------
BATCH = 2
SEQ = 8
NUM_HIDDENS = 32
NUM_HEADS = 4
NUM_Q = NUM_K = NUM_V = NUM_HEADS      # => f_out = 1 (required, see note above)
F_OUT = NUM_Q // NUM_HEADS             # == 1
DROPOUT = 0.0                          # eval mode: Dropout is identity

_HP = jax.lax.Precision.HIGHEST


# ------------------------------ Pallas kernel ------------------------------
def _mha_sad_kernel(q_ref, k_ref, v_ref, wq_ref, wk_ref, wv_ref,
                    cb_ref, wh_ref, seg_ref, beff_ref, o_ref):
    """Whole forward pass in one gridless invocation.

    q/k/v_ref : (B, S, HID) activations                                  [VMEM]
    wq/wk/wv  : (HID, H)    projection weights with FF scale folded       [VMEM]
    cb_ref    : (3, H)      folded FF biases  (bias*w_ff + b_ff)          [VMEM]
    wh_ref    : (1, H)      w_out * w_head  (self.out + head_NN fold)     [VMEM]
    seg_ref   : (S*H, H)    0/1 segment-sum matrix, seg[j*H+h, h']=h==h'  [VMEM]
    beff_ref  : (1,)        b_out*sum(w_head) + b_head                    [SMEM]
    o_ref     : (1, B*S)    lane-dense output row                         [VMEM]
    """
    B, S, HID = q_ref.shape
    H = wq_ref.shape[1]
    M = B * S              # tokens
    L = S * H              # (key, head) lane axis

    f32 = jnp.float32

    # ---- q/k/v projections + folded FeedForward(Linear(1,1)) + ReLU --------
    def proj(x_ref, w_ref, row):
        x2d = x_ref[...].reshape(M, HID)                          # free reshape
        y = jnp.dot(x2d, w_ref[...], precision=_HP,
                    preferred_element_type=f32)                   # (M, H) MXU
        return jnp.maximum(y + cb_ref[row:row + 1, :], 0.0)

    Qp = proj(q_ref, wq_ref, 0)                                   # (M, H)
    Kp = proj(k_ref, wk_ref, 1)
    Vp = proj(v_ref, wv_ref, 2)

    # ---- lane-dense (key, head) layout: lane index j*H + h ------------------
    def rows_to_lanes(x):                                         # (M, H) -> (B, S*H)
        x3 = x.reshape(B, S, H)                                   # free reshape
        return jnp.concatenate([x3[:, j, :] for j in range(S)], axis=-1)

    k_row = rows_to_lanes(Kp)                                     # (B, L)
    v_row = rows_to_lanes(Vp)                                     # (B, L)

    # scores[b, i, j*H+h] = Q[b,i,h] * K[b,j,h]
    # (d_k = f_out = 1 -> no 1/sqrt scale; mask is None; dropout identity in eval)
    q_b = jnp.concatenate([Qp] * S, axis=-1).reshape(B, S, L)     # lane tile + free reshape
    s = q_b * k_row[:, None, :]                                   # (B, S, L)

    # softmax over the key axis j: subtracting any per-(b,i) constant is exact,
    # so the cheap full-lane max is used for numerical stability.
    m = jnp.max(s, axis=-1, keepdims=True)                        # (B, S, 1)
    e = jnp.exp(s - m)                                            # (B, S, L)

    # per-head key-axis sums via the MXU against the constant 0/1 segment matrix
    e2 = e.reshape(M, L)                                          # free reshape
    ev2 = (e * v_row[:, None, :]).reshape(M, L)                   # free reshape
    denom = jnp.dot(e2, seg_ref[...], precision=_HP,
                    preferred_element_type=f32)                   # (M, H)
    num = jnp.dot(ev2, seg_ref[...], precision=_HP,
                  preferred_element_type=f32)                     # (M, H)
    attn = num * pl.reciprocal(denom)                             # exact (approx=False)

    # self.out (Linear(1,1)) + head_NN (Linear(H,1)) folded into wh / b_eff;
    # dot_general emits the lane-dense (1, B*S) row directly.
    y_row = jax.lax.dot_general(wh_ref[...], attn,
                                (((1,), (1,)), ((), ())),
                                precision=_HP,
                                preferred_element_type=f32)       # (1, M)
    o_ref[...] = y_row + beff_ref[0]


# ------------------------------ one-time parameter prep ------------------------------
def prepare_params(p):
    """Exact algebraic folds, executed ONCE outside the hot path."""
    assert NUM_Q == NUM_HEADS and F_OUT == 1, (
        "MultiHeadAttention_SAD with output_structure=None is only "
        "shape-consistent when f_out == num_q // num_heads == 1")
    f32 = jnp.float32
    H = NUM_HEADS

    # FeedForward (Linear(1,1)) scale folded into the projection weights,
    # its bias folded with the projection bias.
    wq = (p["wq"].T * p["w_qff"]).astype(f32)                     # (HID, H)
    wk = (p["wk"].T * p["w_kff"]).astype(f32)
    wv = (p["wv"].T * p["w_vff"]).astype(f32)
    cq = p["bq"] * p["w_qff"] + p["b_qff"]
    ck = p["bk"] * p["w_kff"] + p["b_kff"]
    cv = p["bv"] * p["w_vff"] + p["b_vff"]
    cb = jnp.stack([cq, ck, cv]).astype(f32)                      # (3, H)

    # self.out (Linear(1,1)) + head_NN (Linear(H,1)) fold.
    whead = (p["w_out"] * p["w_head"]).astype(f32)                # (1, H)
    b_eff = (p["b_out"] * jnp.sum(p["w_head"]) + p["b_head"]).reshape(1).astype(f32)

    # Constant 0/1 segment-sum matrix for the per-head key-axis reductions.
    L = SEQ * H
    seg = (jnp.arange(L)[:, None] % H == jnp.arange(H)[None, :]).astype(f32)  # (L, H)

    return dict(wq=wq, wk=wk, wv=wv, cb=cb, whead=whead, b_eff=b_eff, seg=seg)


# ------------------------------ wrapper (hot path) ------------------------------
def mha_sad_pallas(q, k, v, prep):
    B, S, _ = q.shape
    vmem = pl.BlockSpec(memory_space=pltpu.MemorySpace.VMEM)
    smem = pl.BlockSpec(memory_space=pltpu.MemorySpace.SMEM)

    out_row = pl.pallas_call(
        _mha_sad_kernel,
        out_shape=jax.ShapeDtypeStruct((1, B * S), jnp.float32),
        # Gridless: single invocation, all operands resident in VMEM (~10 KB).
        in_specs=[vmem, vmem, vmem,          # q, k, v
                  vmem, vmem, vmem,          # wq, wk, wv
                  vmem, vmem, vmem,          # cb, whead, seg
                  smem],                     # b_eff scalar
        out_specs=vmem,
    )(q, k, v, prep["wq"], prep["wk"], prep["wv"],
      prep["cb"], prep["whead"], prep["seg"], prep["b_eff"])

    return out_row.reshape(B, S, 1)          # free bitcast; head_NN output shape


# ------------------------------ pure-JAX reference ------------------------------
def reference_forward(q, k, v, p):
    B, S, _ = q.shape
    H = NUM_HEADS

    def lin(x, w, b):
        return jnp.einsum("bsh,oh->bso", x, w, precision=_HP) + b

    def t_qkv(x):                                  # transpose_qkv
        x = x.reshape(B, S, H, F_OUT)
        x = jnp.transpose(x, (0, 2, 1, 3))
        return x.reshape(B * H, S, F_OUT)

    Q = jax.nn.relu(t_qkv(lin(q, p["wq"], p["bq"])) * p["w_qff"] + p["b_qff"])
    K = jax.nn.relu(t_qkv(lin(k, p["wk"], p["bk"])) * p["w_kff"] + p["b_kff"])
    V = jax.nn.relu(t_qkv(lin(v, p["wv"], p["bv"])) * p["w_vff"] + p["b_vff"])

    scores = jnp.einsum("bqd,bkd->bqk", Q, K, precision=_HP) / math.sqrt(F_OUT)
    scores = jax.nn.softmax(scores, axis=-1)
    out = jnp.einsum("bqk,bkd->bqd", scores, V, precision=_HP)
    out = out * p["w_out"] + p["b_out"]            # self.out : Linear(1, 1)

    out = out.reshape(B, H, S, F_OUT)              # transpose_output
    out = jnp.transpose(out, (0, 2, 1, 3)).reshape(B, S, H * F_OUT)
    return jnp.einsum("bsh,oh->bso", out, p["w_head"], precision=_HP) + p["b_head"]


# ------------------------------ main ------------------------------
if __name__ == "__main__":
    key = jax.random.PRNGKey(0)
    ks = jax.random.split(key, 20)

    params = {
        "wq": jax.random.normal(ks[0], (NUM_Q, NUM_HIDDENS), jnp.float32) * 0.1,
        "bq": jax.random.normal(ks[1], (NUM_Q,), jnp.float32) * 0.1,
        "wk": jax.random.normal(ks[2], (NUM_K, NUM_HIDDENS), jnp.float32) * 0.1,
        "bk": jax.random.normal(ks[3], (NUM_K,), jnp.float32) * 0.1,
        "wv": jax.random.normal(ks[4], (NUM_V, NUM_HIDDENS), jnp.float32) * 0.1,
        "bv": jax.random.normal(ks[5], (NUM_V,), jnp.float32) * 0.1,
        "w_qff": jax.random.normal(ks[6], (), jnp.float32) * 0.5,
        "b_qff": jax.random.normal(ks[7], (), jnp.float32) * 0.1,
        "w_kff": jax.random.normal(ks[8], (), jnp.float32) * 0.5,
        "b_kff": jax.random.normal(ks[9], (), jnp.float32) * 0.1,
        "w_vff": jax.random.normal(ks[10], (), jnp.float32) * 0.5,
        "b_vff": jax.random.normal(ks[11], (), jnp.float32) * 0.1,
        "w_out": jax.random.normal(ks[12], (), jnp.float32) * 0.5,   # Linear(1,1)
        "b_out": jax.random.normal(ks[13], (), jnp.float32) * 0.1,
        "w_head": jax.random.normal(ks[14], (1, NUM_HEADS), jnp.float32) * 0.5,
        "b_head": jax.random.normal(ks[15], (), jnp.float32) * 0.1,
    }

    q = jax.random.normal(ks[16], (BATCH, SEQ, NUM_HIDDENS), jnp.float32)
    k = jax.random.normal(ks[17], (BATCH, SEQ, NUM_HIDDENS), jnp.float32)
    v = jax.random.normal(ks[18], (BATCH, SEQ, NUM_HIDDENS), jnp.float32)

    prep = prepare_params(params)            # one-time; NOT in the per-call hot path
    mha = jax.jit(mha_sad_pallas)

    out = jax.block_until_ready(mha(q, k, v, prep))
    ref = reference_forward(q, k, v, params)

    assert out.shape == (BATCH, SEQ, 1), out.shape
    # All matmuls run at Precision.HIGHEST and the softmax uses an exact
    # reciprocal, so the expected difference vs. the reference is O(1e-6).
    max_err = float(jnp.max(jnp.abs(out - ref)))
    assert max_err < 1e-4, f"kernel/reference mismatch: {max_err}"
    print("KERNEL_OK")
</pallas_src>

<mosaic_0001>
module attributes {stable_mosaic.version = 11 : i64} {
  func.func @_mha_sad_kernel(%arg0: memref<2x8x32xf32, #tpu.memory_space<vmem>>, %arg1: memref<2x8x32xf32, #tpu.memory_space<vmem>>, %arg2: memref<2x8x32xf32, #tpu.memory_space<vmem>>, %arg3: memref<32x4xf32, #tpu.memory_space<vmem>>, %arg4: memref<32x4xf32, #tpu.memory_space<vmem>>, %arg5: memref<32x4xf32, #tpu.memory_space<vmem>>, %arg6: memref<3x4xf32, #tpu.memory_space<vmem>>, %arg7: memref<1x4xf32, #tpu.memory_space<vmem>>, %arg8: memref<32x4xf32, #tpu.memory_space<vmem>>, %arg9: memref<1xf32, #tpu.memory_space<smem>>, %arg10: memref<1x16xf32, #tpu.memory_space<vmem>>) attributes {dimension_semantics = [], scalar_prefetch = 0 : i64, scratch_operands = 0 : i64, tpu.core_type = #tpu.core_type<tc>} {
    %c0 = arith.constant 0 : index
    %c0_0 = arith.constant 0 : index
    %c0_1 = arith.constant 0 : index
    %0 = vector.load %arg0[%c0, %c0_0, %c0_1] : memref<2x8x32xf32, #tpu.memory_space<vmem>>, vector<2x8x32xf32>
    %1 = vector.shape_cast %0 : vector<2x8x32xf32> to vector<16x32xf32>
    %c0_2 = arith.constant 0 : index
    %c0_3 = arith.constant 0 : index
    %2 = vector.load %arg3[%c0_2, %c0_3] : memref<32x4xf32, #tpu.memory_space<vmem>>, vector<32x4xf32>
    %cst = arith.constant dense<0.000000e+00> : vector<16x4xf32>
    %3 = tpu.matmul %1, %2, %cst {dimension_numbers = #tpu.dot_dimension_numbers<[1], [0], [0], [1], [0, 0, 1, 1], [], []>, precision = #tpu.contract_precision<fp32>} : vector<16x32xf32>, vector<32x4xf32>, vector<16x4xf32> -> vector<16x4xf32>
    %c0_4 = arith.constant 0 : index
    %c0_5 = arith.constant 0 : index
    %4 = vector.load %arg6[%c0_4, %c0_5] : memref<3x4xf32, #tpu.memory_space<vmem>>, vector<1x4xf32>
    %5 = vector.broadcast %4 : vector<1x4xf32> to vector<16x4xf32>
    %6 = arith.addf %3, %5 : vector<16x4xf32>
    %cst_6 = arith.constant 0.000000e+00 : f32
    %7 = vector.broadcast %cst_6 : f32 to vector<16x4xf32>
    %8 = arith.maximumf %6, %7 : vector<16x4xf32>
    %c0_7 = arith.constant 0 : index
    %c0_8 = arith.constant 0 : index
    %c0_9 = arith.constant 0 : index
    %9 = vector.load %arg1[%c0_7, %c0_8, %c0_9] : memref<2x8x32xf32, #tpu.memory_space<vmem>>, vector<2x8x32xf32>
    %10 = vector.shape_cast %9 : vector<2x8x32xf32> to vector<16x32xf32>
    %c0_10 = arith.constant 0 : index
    %c0_11 = arith.constant 0 : index
    %11 = vector.load %arg4[%c0_10, %c0_11] : memref<32x4xf32, #tpu.memory_space<vmem>>, vector<32x4xf32>
    %cst_12 = arith.constant dense<0.000000e+00> : vector<16x4xf32>
    %12 = tpu.matmul %10, %11, %cst_12 {dimension_numbers = #tpu.dot_dimension_numbers<[1], [0], [0], [1], [0, 0, 1, 1], [], []>, precision = #tpu.contract_precision<fp32>} : vector<16x32xf32>, vector<32x4xf32>, vector<16x4xf32> -> vector<16x4xf32>
    %c1 = arith.constant 1 : index
    %c0_13 = arith.constant 0 : index
    %13 = vector.load %arg6[%c1, %c0_13] : memref<3x4xf32, #tpu.memory_space<vmem>>, vector<1x4xf32>
    %14 = vector.broadcast %13 : vector<1x4xf32> to vector<16x4xf32>
    %15 = arith.addf %12, %14 : vector<16x4xf32>
    %cst_14 = arith.constant 0.000000e+00 : f32
    %16 = vector.broadcast %cst_14 : f32 to vector<16x4xf32>
    %17 = arith.maximumf %15, %16 : vector<16x4xf32>
    %c0_15 = arith.constant 0 : index
    %c0_16 = arith.constant 0 : index
    %c0_17 = arith.constant 0 : index
    %18 = vector.load %arg2[%c0_15, %c0_16, %c0_17] : memref<2x8x32xf32, #tpu.memory_space<vmem>>, vector<2x8x32xf32>
    %19 = vector.shape_cast %18 : vector<2x8x32xf32> to vector<16x32xf32>
    %c0_18 = arith.constant 0 : index
    %c0_19 = arith.constant 0 : index
    %20 = vector.load %arg5[%c0_18, %c0_19] : memref<32x4xf32, #tpu.memory_space<vmem>>, vector<32x4xf32>
    %cst_20 = arith.constant dense<0.000000e+00> : vector<16x4xf32>
    %21 = tpu.matmul %19, %20, %cst_20 {dimension_numbers = #tpu.dot_dimension_numbers<[1], [0], [0], [1], [0, 0, 1, 1], [], []>, precision = #tpu.contract_precision<fp32>} : vector<16x32xf32>, vector<32x4xf32>, vector<16x4xf32> -> vector<16x4xf32>
    %c2 = arith.constant 2 : index
    %c0_21 = arith.constant 0 : index
    %22 = vector.load %arg6[%c2, %c0_21] : memref<3x4xf32, #tpu.memory_space<vmem>>, vector<1x4xf32>
    %23 = vector.broadcast %22 : vector<1x4xf32> to vector<16x4xf32>
    %24 = arith.addf %21, %23 : vector<16x4xf32>
    %cst_22 = arith.constant 0.000000e+00 : f32
    %25 = vector.broadcast %cst_22 : f32 to vector<16x4xf32>
    %26 = arith.maximumf %24, %25 : vector<16x4xf32>
    %27 = vector.shape_cast %17 : vector<16x4xf32> to vector<2x8x4xf32>
    %28 = vector.extract_strided_slice %27 {offsets = [0, 0, 0], sizes = [2, 1, 4], strides = [1, 1, 1]} : vector<2x8x4xf32> to vector<2x1x4xf32>
    %29 = vector.shape_cast %28 : vector<2x1x4xf32> to vector<2x4xf32>
    %30 = vector.extract_strided_slice %27 {offsets = [0, 1, 0], sizes = [2, 1, 4], strides = [1, 1, 1]} : vector<2x8x4xf32> to vector<2x1x4xf32>
    %31 = vector.shape_cast %30 : vector<2x1x4xf32> to vector<2x4xf32>
    %32 = vector.extract_strided_slice %27 {offsets = [0, 2, 0], sizes = [2, 1, 4], strides = [1, 1, 1]} : vector<2x8x4xf32> to vector<2x1x4xf32>
    %33 = vector.shape_cast %32 : vector<2x1x4xf32> to vector<2x4xf32>
    %34 = vector.extract_strided_slice %27 {offsets = [0, 3, 0], sizes = [2, 1, 4], strides = [1, 1, 1]} : vector<2x8x4xf32> to vector<2x1x4xf32>
    %35 = vector.shape_cast %34 : vector<2x1x4xf32> to vector<2x4xf32>
    %36 = vector.extract_strided_slice %27 {offsets = [0, 4, 0], sizes = [2, 1, 4], strides = [1, 1, 1]} : vector<2x8x4xf32> to vector<2x1x4xf32>
    %37 = vector.shape_cast %36 : vector<2x1x4xf32> to vector<2x4xf32>
    %38 = vector.extract_strided_slice %27 {offsets = [0, 5, 0], sizes = [2, 1, 4], strides = [1, 1, 1]} : vector<2x8x4xf32> to vector<2x1x4xf32>
    %39 = vector.shape_cast %38 : vector<2x1x4xf32> to vector<2x4xf32>
    %40 = vector.extract_strided_slice %27 {offsets = [0, 6, 0], sizes = [2, 1, 4], strides = [1, 1, 1]} : vector<2x8x4xf32> to vector<2x1x4xf32>
    %41 = vector.shape_cast %40 : vector<2x1x4xf32> to vector<2x4xf32>
    %42 = vector.extract_strided_slice %27 {offsets = [0, 7, 0], sizes = [2, 1, 4], strides = [1, 1, 1]} : vector<2x8x4xf32> to vector<2x1x4xf32>
    %43 = vector.shape_cast %42 : vector<2x1x4xf32> to vector<2x4xf32>
    %44 = tpu.concatenate %29, %31, %33, %35, %37, %39, %41, %43 in 1 : vector<2x4xf32>, vector<2x4xf32>, vector<2x4xf32>, vector<2x4xf32>, vector<2x4xf32>, vector<2x4xf32>, vector<2x4xf32>, vector<2x4xf32> -> vector<2x32xf32>
    %45 = vector.shape_cast %26 : vector<16x4xf32> to vector<2x8x4xf32>
    %46 = vector.extract_strided_slice %45 {offsets = [0, 0, 0], sizes = [2, 1, 4], strides = [1, 1, 1]} : vector<2x8x4xf32> to vector<2x1x4xf32>
    %47 = vector.shape_cast %46 : vector<2x1x4xf32> to vector<2x4xf32>
    %48 = vector.extract_strided_slice %45 {offsets = [0, 1, 0], sizes = [2, 1, 4], strides = [1, 1, 1]} : vector<2x8x4xf32> to vector<2x1x4xf32>
    %49 = vector.shape_cast %48 : vector<2x1x4xf32> to vector<2x4xf32>
    %50 = vector.extract_strided_slice %45 {offsets = [0, 2, 0], sizes = [2, 1, 4], strides = [1, 1, 1]} : vector<2x8x4xf32> to vector<2x1x4xf32>
    %51 = vector.shape_cast %50 : vector<2x1x4xf32> to vector<2x4xf32>
    %52 = vector.extract_strided_slice %45 {offsets = [0, 3, 0], sizes = [2, 1, 4], strides = [1, 1, 1]} : vector<2x8x4xf32> to vector<2x1x4xf32>
    %53 = vector.shape_cast %52 : vector<2x1x4xf32> to vector<2x4xf32>
    %54 = vector.extract_strided_slice %45 {offsets = [0, 4, 0], sizes = [2, 1, 4], strides = [1, 1, 1]} : vector<2x8x4xf32> to vector<2x1x4xf32>
    %55 = vector.shape_cast %54 : vector<2x1x4xf32> to vector<2x4xf32>
    %56 = vector.extract_strided_slice %45 {offsets = [0, 5, 0], sizes = [2, 1, 4], strides = [1, 1, 1]} : vector<2x8x4xf32> to vector<2x1x4xf32>
    %57 = vector.shape_cast %56 : vector<2x1x4xf32> to vector<2x4xf32>
    %58 = vector.extract_strided_slice %45 {offsets = [0, 6, 0], sizes = [2, 1, 4], strides = [1, 1, 1]} : vector<2x8x4xf32> to vector<2x1x4xf32>
    %59 = vector.shape_cast %58 : vector<2x1x4xf32> to vector<2x4xf32>
    %60 = vector.extract_strided_slice %45 {offsets = [0, 7, 0], sizes = [2, 1, 4], strides = [1, 1, 1]} : vector<2x8x4xf32> to vector<2x1x4xf32>
    %61 = vector.shape_cast %60 : vector<2x1x4xf32> to vector<2x4xf32>
    %62 = tpu.concatenate %47, %49, %51, %53, %55, %57, %59, %61 in 1 : vector<2x4xf32>, vector<2x4xf32>, vector<2x4xf32>, vector<2x4xf32>, vector<2x4xf32>, vector<2x4xf32>, vector<2x4xf32>, vector<2x4xf32> -> vector<2x32xf32>
    %63 = tpu.concatenate %8, %8, %8, %8, %8, %8, %8, %8 in 1 : vector<16x4xf32>, vector<16x4xf32>, vector<16x4xf32>, vector<16x4xf32>, vector<16x4xf32>, vector<16x4xf32>, vector<16x4xf32>, vector<16x4xf32> -> vector<16x32xf32>
    %64 = vector.shape_cast %63 : vector<16x32xf32> to vector<2x8x32xf32>
    %65 = vector.shape_cast %44 : vector<2x32xf32> to vector<2x1x32xf32>
    %66 = vector.broadcast %65 : vector<2x1x32xf32> to vector<2x8x32xf32>
    %67 = arith.mulf %64, %66 : vector<2x8x32xf32>
    %cst_23 = arith.constant dense<0xFF800000> : vector<2x8xf32>
    %68 = vector.multi_reduction <maximumf>, %67, %cst_23 [2] : vector<2x8x32xf32> to vector<2x8xf32>
    %69 = vector.shape_cast %68 : vector<2x8xf32> to vector<2x8x1xf32>
    %70 = vector.broadcast %69 : vector<2x8x1xf32> to vector<2x8x32xf32>
    %71 = arith.subf %67, %70 : vector<2x8x32xf32>
    %72 = math.exp %71 : vector<2x8x32xf32>
    %73 = vector.shape_cast %72 : vector<2x8x32xf32> to vector<16x32xf32>
    %74 = vector.shape_cast %62 : vector<2x32xf32> to vector<2x1x32xf32>
    %75 = vector.broadcast %74 : vector<2x1x32xf32> to vector<2x8x32xf32>
    %76 = arith.mulf %72, %75 : vector<2x8x32xf32>
    %77 = vector.shape_cast %76 : vector<2x8x32xf32> to vector<16x32xf32>
    %c0_24 = arith.constant 0 : index
    %c0_25 = arith.constant 0 : index
    %78 = vector.load %arg8[%c0_24, %c0_25] : memref<32x4xf32, #tpu.memory_space<vmem>>, vector<32x4xf32>
    %cst_26 = arith.constant dense<0.000000e+00> : vector<16x4xf32>
    %79 = tpu.matmul %73, %78, %cst_26 {dimension_numbers = #tpu.dot_dimension_numbers<[1], [0], [0], [1], [0, 0, 1, 1], [], []>, precision = #tpu.contract_precision<fp32>} : vector<16x32xf32>, vector<32x4xf32>, vector<16x4xf32> -> vector<16x4xf32>
    %c0_27 = arith.constant 0 : index
    %c0_28 = arith.constant 0 : index
    %80 = vector.load %arg8[%c0_27, %c0_28] : memref<32x4xf32, #tpu.memory_space<vmem>>, vector<32x4xf32>
    %cst_29 = arith.constant dense<0.000000e+00> : vector<16x4xf32>
    %81 = tpu.matmul %77, %80, %cst_29 {dimension_numbers = #tpu.dot_dimension_numbers<[1], [0], [0], [1], [0, 0, 1, 1], [], []>, precision = #tpu.contract_precision<fp32>} : vector<16x32xf32>, vector<32x4xf32>, vector<16x4xf32> -> vector<16x4xf32>
    %82 = tpu.reciprocal %79 : vector<16x4xf32> -> vector<16x4xf32>
    %83 = arith.mulf %81, %82 : vector<16x4xf32>
    %c0_30 = arith.constant 0 : index
    %c0_31 = arith.constant 0 : index
    %84 = vector.load %arg7[%c0_30, %c0_31] : memref<1x4xf32, #tpu.memory_space<vmem>>, vector<1x4xf32>
    %cst_32 = arith.constant dense<0.000000e+00> : vector<1x16xf32>
    %85 = tpu.matmul %84, %83, %cst_32 {dimension_numbers = #tpu.dot_dimension_numbers<[1], [1], [0], [0], [0, 0, 1, 0], [], []>, precision = #tpu.contract_precision<fp32>} : vector<1x4xf32>, vector<16x4xf32>, vector<1x16xf32> -> vector<1x16xf32>
    %c0_33 = arith.constant 0 : index
    %86 = memref.load %arg9[%c0_33] : memref<1xf32, #tpu.memory_space<smem>>
    %87 = vector.broadcast %86 : f32 to vector<1x16xf32>
    %88 = arith.addf %85, %87 : vector<1x16xf32>
    %c0_34 = arith.constant 0 : index
    %c0_35 = arith.constant 0 : index
    %89 = vector.load %arg10[%c0_34, %c0_35] : memref<1x16xf32, #tpu.memory_space<vmem>>, vector<1x16xf32>
    tpu.vector_store %arg10[%c0_34, %c0_35], %88 {strides = array<i32>} : memref<1x16xf32, #tpu.memory_space<vmem>>, vector<1x16xf32>,
    return
  }
}

</mosaic_0001>

<llo_original>
// kernel: mha_sad_pallas.1
$region0: #{mha_sad_pallas.1}
  #allocation0 [shape = 'u32[]', space=smem, size = 0x4, offset = 0x4, fixed_abs, tag = 'smem constant byte address 0x4 - core index']
  #allocation1 [shape = 'u32[72,128]{1,0:T(1,128)}', space=vmem, size = 0x9000, scoped, tag = 'internal scratch']
  #allocation2 [shape = 'f32[1]{0:T(128)S(6)}', space=smem, size = 0x200, scoped, tag = 'scoped memory for mha_sad_pallas.1']
  %s0 = inlined_call_operand.vmem [shape: f32[2,8,32], index: 0, kind: input, shape index: {}]
  %s1 = inlined_call_operand.vmem [shape: f32[2,8,32], index: 1, kind: input, shape index: {}]
  %s2 = inlined_call_operand.vmem [shape: f32[2,8,32], index: 2, kind: input, shape index: {}]
  %s3 = inlined_call_operand.vmem [shape: f32[32,4], index: 3, kind: input, shape index: {}]
  %s4 = inlined_call_operand.vmem [shape: f32[32,4], index: 4, kind: input, shape index: {}]
  %s5 = inlined_call_operand.vmem [shape: f32[32,4], index: 5, kind: input, shape index: {}]
  %s6 = inlined_call_operand.vmem [shape: f32[3,4], index: 6, kind: input, shape index: {}]
  %s7 = inlined_call_operand.vmem [shape: f32[1,4], index: 7, kind: input, shape index: {}]
  %s8 = inlined_call_operand.vmem [shape: f32[32,4], index: 8, kind: input, shape index: {}]
  %s9 = inlined_call_operand.<no memory space> [shape: f32[1], index: 9, kind: input, shape index: {}]
  %s10 = inlined_call_operand.vmem [shape: f32[1,16], index: 10, kind: output, shape index: {}]
  %s11 = sld [smem:[#allocation0]]
  $region50: #{mha_sad_pallas.1} parent=0
    _
  %s13 = ssub.s32 1, %s11
  %s14 = scalar_select 0, %s13, %s11
  %15 = sst [smem:[#allocation2]] %s9
  // Predicated region
  $region2: #{mha_sad_pallas.1} parent=0 // pred_check
    _
  $region3: #{mha_sad_pallas.1} parent=0 // pred_check_branch
    %17 = sbr.rel (0) target = $region5
  $region4: #{mha_sad_pallas.1} parent=0 // pred_region
    _
  $region5: #{mha_sad_pallas.1} parent=0 // pred_fallthru
    _
  // Predicated region
  $region6: #{mha_sad_pallas.1} parent=0 // pred_check
    _
  $region7: #{mha_sad_pallas.1} parent=0 // pred_check_branch
    %19 = sbr.rel (0) target = $region9
  $region8: #{mha_sad_pallas.1} parent=0 // pred_region
    _
  $region9: #{mha_sad_pallas.1} parent=0 // pred_fallthru
    _
  // Predicated region
  $region10: #{mha_sad_pallas.1} parent=0 // pred_check
    _
  $region11: #{mha_sad_pallas.1} parent=0 // pred_check_branch
    %21 = sbr.rel (0) target = $region13
  $region12: #{mha_sad_pallas.1} parent=0 // pred_region
    _
  $region13: #{mha_sad_pallas.1} parent=0 // pred_fallthru
    _
  // Predicated region
  $region14: #{mha_sad_pallas.1} parent=0 // pred_check
    _
  $region15: #{mha_sad_pallas.1} parent=0 // pred_check_branch
    %23 = sbr.rel (0) target = $region17
  $region16: #{mha_sad_pallas.1} parent=0 // pred_region
    _
  $region17: #{mha_sad_pallas.1} parent=0 // pred_fallthru
    _
  // Predicated region
  $region18: #{mha_sad_pallas.1} parent=0 // pred_check
    _
  $region19: #{mha_sad_pallas.1} parent=0 // pred_check_branch
    %25 = sbr.rel (0) target = $region21
  $region20: #{mha_sad_pallas.1} parent=0 // pred_region
    _
  $region21: #{mha_sad_pallas.1} parent=0 // pred_fallthru
    _
  // Predicated region
  $region22: #{mha_sad_pallas.1} parent=0 // pred_check
    _
  $region23: #{mha_sad_pallas.1} parent=0 // pred_check_branch
    %27 = sbr.rel (0) target = $region25
  $region24: #{mha_sad_pallas.1} parent=0 // pred_region
    _
  $region25: #{mha_sad_pallas.1} parent=0 // pred_fallthru
    _
  // Predicated region
  $region26: #{mha_sad_pallas.1} parent=0 // pred_check
    _
  $region27: #{mha_sad_pallas.1} parent=0 // pred_check_branch
    %29 = sbr.rel (0) target = $region29
  $region28: #{mha_sad_pallas.1} parent=0 // pred_region
    _
  $region29: #{mha_sad_pallas.1} parent=0 // pred_fallthru
    _
  // Predicated region
  $region30: #{mha_sad_pallas.1} parent=0 // pred_check
    _
  $region31: #{mha_sad_pallas.1} parent=0 // pred_check_branch
    %31 = sbr.rel (0) target = $region33
  $region32: #{mha_sad_pallas.1} parent=0 // pred_region
    _
  $region33: #{mha_sad_pallas.1} parent=0 // pred_fallthru
    _
  // Predicated region
  $region34: #{mha_sad_pallas.1} parent=0 // pred_check
    _
  $region35: #{mha_sad_pallas.1} parent=0 // pred_check_branch
    %33 = sbr.rel (0) target = $region37
  $region36: #{mha_sad_pallas.1} parent=0 // pred_region
    _
  $region37: #{mha_sad_pallas.1} parent=0 // pred_fallthru
    _
  // Predicated region
  $region38: #{mha_sad_pallas.1} parent=0 // pred_check
    _
  $region39: #{mha_sad_pallas.1} parent=0 // pred_check_branch
    %35 = sbr.rel (0) target = $region41
  $region40: #{mha_sad_pallas.1} parent=0 // pred_region
    _
  $region41: #{mha_sad_pallas.1} parent=0 // pred_fallthru
    _
  %v36 = vld [vmem:[%s0] sm:$0xff]
  %v37 = vld [vmem:[%s0 + $0x8] sm:$0xff]
  %v38 = vld [vmem:[%s3] sm:$0xff]
  %v39 = vld [vmem:[%s3 + $0x8] sm:$0xff]
  %v40 = vld [vmem:[%s3 + $0x10] sm:$0xff]
  %v41 = vld [vmem:[%s3 + $0x18] sm:$0xff]
  %v42 = vld [vmem:[%s6] sm:$0x1]
  %v43 = vperm.slane %v42, 0
  %vm44 = vcmask 261120
  %v46 = vsel %vm44, %v36, 0
  %v49 = vsel %vm44, %v37, 0
  %51 = vmatpush.msra.mxu0 0.0
  %52 = vmatpush.msra.mxu0 0.0
  %53 = vmatpush.msra.mxu0 0.0
  %54 = vmatpush.msra.mxu0 0.0
  %55 = vmatpush.msra.mxu0 0.0
  %56 = vmatpush.msra.mxu0 0.0
  %57 = vmatpush.msra.mxu0 0.0
  %58 = vmatpush.msra.mxu0 0.0
  %59 = vmatpush.msra.mxu0 0.0
  %60 = vmatpush.msra.mxu0 0.0
  %61 = vmatpush.msra.mxu0 0.0
  %62 = vmatpush.msra.mxu0 0.0
  %v63 = vand.u32 %v41, 4294901760
  %64 = vmatpush.msra.mxu0 %v63
  %v65 = vand.u32 %v40, 4294901760
  %66 = vmatpush.msra.mxu0 %v65
  %v67 = vand.u32 %v39, 4294901760
  %68 = vmatpush.msra.mxu0 %v67
  %v69 = vand.u32 %v38, 4294901760
  %70 = vmatpush.msra.mxu0 %v69
  %v71 = vand.u32 %v46, 4294901760
  %v72 = vsub.f32 %v46, %v71
  %v73 = vand.u32 %v72, 4294901760
  %v74 = vsub.f32 %v72, %v73
  %v75 = vand.u32 %v74, 4294901760
  %76 = vmatmul.f32.gmra.mxu0 %v75
  %v77 = vpop.f32.mrf.mxu0
  %v78 = vadd.f32 %v43, %v77
  %v79 = vand.u32 %v49, 4294901760
  %v80 = vsub.f32 %v49, %v79
  %v81 = vand.u32 %v80, 4294901760
  %v82 = vsub.f32 %v80, %v81
  %v83 = vand.u32 %v82, 4294901760
  %84 = vmatmul.f32.gmra.mxu0 %v83
  %v85 = vpop.f32.mrf.mxu0
  %v86 = vadd.f32 %v43, %v85
  %87 = vdwg.mxu0
  %88 = vmatpush.msra.mxu0 0.0
  %89 = vmatpush.msra.mxu0 0.0
  %90 = vmatpush.msra.mxu0 0.0
  %91 = vmatpush.msra.mxu0 0.0
  %92 = vmatpush.msra.mxu0 0.0
  %93 = vmatpush.msra.mxu0 0.0
  %94 = vmatpush.msra.mxu0 0.0
  %95 = vmatpush.msra.mxu0 0.0
  %96 = vmatpush.msra.mxu0 0.0
  %97 = vmatpush.msra.mxu0 0.0
  %98 = vmatpush.msra.mxu0 0.0
  %99 = vmatpush.msra.mxu0 0.0
  %v100 = vand.u32 %v41, 4294901760
  %v101 = vsub.f32 %v41, %v100
  %v102 = vand.u32 %v101, 4294901760
  %v103 = vsub.f32 %v101, %v102
  %v104 = vand.u32 %v103, 4294901760
  %105 = vmatpush.msra.mxu0 %v104
  %v106 = vand.u32 %v40, 4294901760
  %v107 = vsub.f32 %v40, %v106
  %v108 = vand.u32 %v107, 4294901760
  %v109 = vsub.f32 %v107, %v108
  %v110 = vand.u32 %v109, 4294901760
  %111 = vmatpush.msra.mxu0 %v110
  %v112 = vand.u32 %v39, 4294901760
  %v113 = vsub.f32 %v39, %v112
  %v114 = vand.u32 %v113, 4294901760
  %v115 = vsub.f32 %v113, %v114
  %v116 = vand.u32 %v115, 4294901760
  %117 = vmatpush.msra.mxu0 %v116
  %v118 = vand.u32 %v38, 4294901760
  %v119 = vsub.f32 %v38, %v118
  %v120 = vand.u32 %v119, 4294901760
  %v121 = vsub.f32 %v119, %v120
  %v122 = vand.u32 %v121, 4294901760
  %123 = vmatpush.msra.mxu0 %v122
  %v124 = vand.u32 %v46, 4294901760
  %125 = vmatmul.f32.gmra.mxu0 %v124
  %v126 = vpop.f32.mrf.mxu0
  %v127 = vadd.f32 %v78, %v126
  %v128 = vand.u32 %v49, 4294901760
  %129 = vmatmul.f32.gmra.mxu0 %v128
  %v130 = vpop.f32.mrf.mxu0
  %v131 = vadd.f32 %v86, %v130
  %132 = vdwg.mxu0
  %133 = vmatpush.msra.mxu0 0.0
  %134 = vmatpush.msra.mxu0 0.0
  %135 = vmatpush.msra.mxu0 0.0
  %136 = vmatpush.msra.mxu0 0.0
  %137 = vmatpush.msra.mxu0 0.0
  %138 = vmatpush.msra.mxu0 0.0
  %139 = vmatpush.msra.mxu0 0.0
  %140 = vmatpush.msra.mxu0 0.0
  %141 = vmatpush.msra.mxu0 0.0
  %142 = vmatpush.msra.mxu0 0.0
  %143 = vmatpush.msra.mxu0 0.0
  %144 = vmatpush.msra.mxu0 0.0
  %v145 = vand.u32 %v41, 4294901760
  %v146 = vsub.f32 %v41, %v145
  %147 = vmatpush.msra.mxu0 %v146
  %v148 = vand.u32 %v40, 4294901760
  %v149 = vsub.f32 %v40, %v148
  %150 = vmatpush.msra.mxu0 %v149
  %v151 = vand.u32 %v39, 4294901760
  %v152 = vsub.f32 %v39, %v151
  %153 = vmatpush.msra.mxu0 %v152
  %v154 = vand.u32 %v38, 4294901760
  %v155 = vsub.f32 %v38, %v154
  %156 = vmatpush.msra.mxu0 %v155
  %v157 = vand.u32 %v46, 4294901760
  %v158 = vsub.f32 %v46, %v157
  %159 = vmatmul.f32.gmra.mxu0 %v158
  %v160 = vpop.f32.mrf.mxu0
  %v161 = vadd.f32 %v127, %v160
  %v162 = vand.u32 %v49, 4294901760
  %v163 = vsub.f32 %v49, %v162
  %164 = vmatmul.f32.gmra.mxu0 %v163
  %v165 = vpop.f32.mrf.mxu0
  %v166 = vadd.f32 %v131, %v165
  %167 = vdwg.mxu0
  %168 = vmatpush.msra.mxu0 0.0
  %169 = vmatpush.msra.mxu0 0.0
  %170 = vmatpush.msra.mxu0 0.0
  %171 = vmatpush.msra.mxu0 0.0
  %172 = vmatpush.msra.mxu0 0.0
  %173 = vmatpush.msra.mxu0 0.0
  %174 = vmatpush.msra.mxu0 0.0
  %175 = vmatpush.msra.mxu0 0.0
  %176 = vmatpush.msra.mxu0 0.0
  %177 = vmatpush.msra.mxu0 0.0
  %178 = vmatpush.msra.mxu0 0.0
  %179 = vmatpush.msra.mxu0 0.0
  %v180 = vand.u32 %v41, 4294901760
  %181 = vmatpush.msra.mxu0 %v180
  %v182 = vand.u32 %v40, 4294901760
  %183 = vmatpush.msra.mxu0 %v182
  %v184 = vand.u32 %v39, 4294901760
  %185 = vmatpush.msra.mxu0 %v184
  %v186 = vand.u32 %v38, 4294901760
  %187 = vmatpush.msra.mxu0 %v186
  %v188 = vand.u32 %v46, 4294901760
  %v189 = vsub.f32 %v46, %v188
  %v190 = vand.u32 %v189, 4294901760
  %191 = vmatmul.f32.gmra.mxu0 %v190
  %v192 = vpop.f32.mrf.mxu0
  %v193 = vadd.f32 %v161, %v192
  %v194 = vand.u32 %v49, 4294901760
  %v195 = vsub.f32 %v49, %v194
  %v196 = vand.u32 %v195, 4294901760
  %197 = vmatmul.f32.gmra.mxu0 %v196
  %v198 = vpop.f32.mrf.mxu0
  %v199 = vadd.f32 %v166, %v198
  %200 = vdwg.mxu0
  %201 = vmatpush.msra.mxu0 0.0
  %202 = vmatpush.msra.mxu0 0.0
  %203 = vmatpush.msra.mxu0 0.0
  %204 = vmatpush.msra.mxu0 0.0
  %205 = vmatpush.msra.mxu0 0.0
  %206 = vmatpush.msra.mxu0 0.0
  %207 = vmatpush.msra.mxu0 0.0
  %208 = vmatpush.msra.mxu0 0.0
  %209 = vmatpush.msra.mxu0 0.0
  %210 = vmatpush.msra.mxu0 0.0
  %211 = vmatpush.msra.mxu0 0.0
  %212 = vmatpush.msra.mxu0 0.0
  %v213 = vand.u32 %v41, 4294901760
  %v214 = vsub.f32 %v41, %v213
  %v215 = vand.u32 %v214, 4294901760
  %216 = vmatpush.msra.mxu0 %v215
  %v217 = vand.u32 %v40, 4294901760
  %v218 = vsub.f32 %v40, %v217
  %v219 = vand.u32 %v218, 4294901760
  %220 = vmatpush.msra.mxu0 %v219
  %v221 = vand.u32 %v39, 4294901760
  %v222 = vsub.f32 %v39, %v221
  %v223 = vand.u32 %v222, 4294901760
  %224 = vmatpush.msra.mxu0 %v223
  %v225 = vand.u32 %v38, 4294901760
  %v226 = vsub.f32 %v38, %v225
  %v227 = vand.u32 %v226, 4294901760
  %228 = vmatpush.msra.mxu0 %v227
  %v229 = vand.u32 %v46, 4294901760
  %230 = vmatmul.f32.gmra.mxu0 %v229
  %v231 = vpop.f32.mrf.mxu0
  %v232 = vadd.f32 %v193, %v231
  %v233 = vand.u32 %v49, 4294901760
  %234 = vmatmul.f32.gmra.mxu0 %v233
  %v235 = vpop.f32.mrf.mxu0
  %v236 = vadd.f32 %v199, %v235
  %237 = vdwg.mxu0
  %238 = vmatpush.msra.mxu0 0.0
  %239 = vmatpush.msra.mxu0 0.0
  %240 = vmatpush.msra.mxu0 0.0
  %241 = vmatpush.msra.mxu0 0.0
  %242 = vmatpush.msra.mxu0 0.0
  %243 = vmatpush.msra.mxu0 0.0
  %244 = vmatpush.msra.mxu0 0.0
  %245 = vmatpush.msra.mxu0 0.0
  %246 = vmatpush.msra.mxu0 0.0
  %247 = vmatpush.msra.mxu0 0.0
  %248 = vmatpush.msra.mxu0 0.0
  %249 = vmatpush.msra.mxu0 0.0
  %v250 = vand.u32 %v41, 4294901760
  %251 = vmatpush.msra.mxu0 %v250
  %v252 = vand.u32 %v40, 4294901760
  %253 = vmatpush.msra.mxu0 %v252
  %v254 = vand.u32 %v39, 4294901760
  %255 = vmatpush.msra.mxu0 %v254
  %v256 = vand.u32 %v38, 4294901760
  %257 = vmatpush.msra.mxu0 %v256
  %v258 = vand.u32 %v46, 4294901760
  %259 = vmatmul.f32.gmra.mxu0 %v258
  %v260 = vpop.f32.mrf.mxu0
  %v261 = vadd.f32 %v232, %v260
  %v262 = vand.u32 %v49, 4294901760
  %263 = vmatmul.f32.gmra.mxu0 %v262
  %v264 = vpop.f32.mrf.mxu0
  %v265 = vadd.f32 %v236, %v264
  %266 = vdwg.mxu0
  %v267 = vmax.f32 %v261, 0.0
  %v268 = vmax.f32 %v265, 0.0
  %v269 = vld [vmem:[%s1] sm:$0xff]
  %v270 = vld [vmem:[%s1 + $0x8] sm:$0xff]
  %v271 = vld [vmem:[%s4] sm:$0xff]
  %v272 = vld [vmem:[%s4 + $0x8] sm:$0xff]
  %v273 = vld [vmem:[%s4 + $0x10] sm:$0xff]
  %v274 = vld [vmem:[%s4 + $0x18] sm:$0xff]
  %v275 = vld [vmem:[%s6 + $0x1] sm:$0x1]
  %v276 = vperm.slane %v275, 0
  %v278 = vsel %vm44, %v269, 0
  %v281 = vsel %vm44, %v270, 0
  %283 = vmatpush.msra.mxu0 0.0
  %284 = vmatpush.msra.mxu0 0.0
  %285 = vmatpush.msra.mxu0 0.0
  %286 = vmatpush.msra.mxu0 0.0
  %287 = vmatpush.msra.mxu0 0.0
  %288 = vmatpush.msra.mxu0 0.0
  %289 = vmatpush.msra.mxu0 0.0
  %290 = vmatpush.msra.mxu0 0.0
  %291 = vmatpush.msra.mxu0 0.0
  %292 = vmatpush.msra.mxu0 0.0
  %293 = vmatpush.msra.mxu0 0.0
  %294 = vmatpush.msra.mxu0 0.0
  %v295 = vand.u32 %v274, 4294901760
  %296 = vmatpush.msra.mxu0 %v295
  %v297 = vand.u32 %v273, 4294901760
  %298 = vmatpush.msra.mxu0 %v297
  %v299 = vand.u32 %v272, 4294901760
  %300 = vmatpush.msra.mxu0 %v299
  %v301 = vand.u32 %v271, 4294901760
  %302 = vmatpush.msra.mxu0 %v301
  %v303 = vand.u32 %v278, 4294901760
  %v304 = vsub.f32 %v278, %v303
  %v305 = vand.u32 %v304, 4294901760
  %v306 = vsub.f32 %v304, %v305
  %v307 = vand.u32 %v306, 4294901760
  %308 = vmatmul.f32.gmra.mxu0 %v307
  %v309 = vpop.f32.mrf.mxu0
  %v310 = vadd.f32 %v276, %v309
  %v311 = vand.u32 %v281, 4294901760
  %v312 = vsub.f32 %v281, %v311
  %v313 = vand.u32 %v312, 4294901760
  %v314 = vsub.f32 %v312, %v313
  %v315 = vand.u32 %v314, 4294901760
  %316 = vmatmul.f32.gmra.mxu0 %v315
  %v317 = vpop.f32.mrf.mxu0
  %v318 = vadd.f32 %v276, %v317
  %319 = vdwg.mxu0
  %320 = vmatpush.msra.mxu0 0.0
  %321 = vmatpush.msra.mxu0 0.0
  %322 = vmatpush.msra.mxu0 0.0
  %323 = vmatpush.msra.mxu0 0.0
  %324 = vmatpush.msra.mxu0 0.0
  %325 = vmatpush.msra.mxu0 0.0
  %326 = vmatpush.msra.mxu0 0.0
  %327 = vmatpush.msra.mxu0 0.0
  %328 = vmatpush.msra.mxu0 0.0
  %329 = vmatpush.msra.mxu0 0.0
  %330 = vmatpush.msra.mxu0 0.0
  %331 = vmatpush.msra.mxu0 0.0
  %v332 = vand.u32 %v274, 4294901760
  %v333 = vsub.f32 %v274, %v332
  %v334 = vand.u32 %v333, 4294901760
  %v335 = vsub.f32 %v333, %v334
  %v336 = vand.u32 %v335, 4294901760
  %337 = vmatpush.msra.mxu0 %v336
  %v338 = vand.u32 %v273, 4294901760
  %v339 = vsub.f32 %v273, %v338
  %v340 = vand.u32 %v339, 4294901760
  %v341 = vsub.f32 %v339, %v340
  %v342 = vand.u32 %v341, 4294901760
  %343 = vmatpush.msra.mxu0 %v342
  %v344 = vand.u32 %v272, 4294901760
  %v345 = vsub.f32 %v272, %v344
  %v346 = vand.u32 %v345, 4294901760
  %v347 = vsub.f32 %v345, %v346
  %v348 = vand.u32 %v347, 4294901760
  %349 = vmatpush.msra.mxu0 %v348
  %v350 = vand.u32 %v271, 4294901760
  %v351 = vsub.f32 %v271, %v350
  %v352 = vand.u32 %v351, 4294901760
  %v353 = vsub.f32 %v351, %v352
  %v354 = vand.u32 %v353, 4294901760
  %355 = vmatpush.msra.mxu0 %v354
  %v356 = vand.u32 %v278, 4294901760
  %357 = vmatmul.f32.gmra.mxu0 %v356
  %v358 = vpop.f32.mrf.mxu0
  %v359 = vadd.f32 %v310, %v358
  %v360 = vand.u32 %v281, 4294901760
  %361 = vmatmul.f32.gmra.mxu0 %v360
  %v362 = vpop.f32.mrf.mxu0
  %v363 = vadd.f32 %v318, %v362
  %364 = vdwg.mxu0
  %365 = vmatpush.msra.mxu0 0.0
  %366 = vmatpush.msra.mxu0 0.0
  %367 = vmatpush.msra.mxu0 0.0
  %368 = vmatpush.msra.mxu0 0.0
  %369 = vmatpush.msra.mxu0 0.0
  %370 = vmatpush.msra.mxu0 0.0
  %371 = vmatpush.msra.mxu0 0.0
  %372 = vmatpush.msra.mxu0 0.0
  %373 = vmatpush.msra.mxu0 0.0
  %374 = vmatpush.msra.mxu0 0.0
  %375 = vmatpush.msra.mxu0 0.0
  %376 = vmatpush.msra.mxu0 0.0
  %v377 = vand.u32 %v274, 4294901760
  %v378 = vsub.f32 %v274, %v377
  %379 = vmatpush.msra.mxu0 %v378
  %v380 = vand.u32 %v273, 4294901760
  %v381 = vsub.f32 %v273, %v380
  %382 = vmatpush.msra.mxu0 %v381
  %v383 = vand.u32 %v272, 4294901760
  %v384 = vsub.f32 %v272, %v383
  %385 = vmatpush.msra.mxu0 %v384
  %v386 = vand.u32 %v271, 4294901760
  %v387 = vsub.f32 %v271, %v386
  %388 = vmatpush.msra.mxu0 %v387
  %v389 = vand.u32 %v278, 4294901760
  %v390 = vsub.f32 %v278, %v389
  %391 = vmatmul.f32.gmra.mxu0 %v390
  %v392 = vpop.f32.mrf.mxu0
  %v393 = vadd.f32 %v359, %v392
  %v394 = vand.u32 %v281, 4294901760
  %v395 = vsub.f32 %v281, %v394
  %396 = vmatmul.f32.gmra.mxu0 %v395
  %v397 = vpop.f32.mrf.mxu0
  %v398 = vadd.f32 %v363, %v397
  %399 = vdwg.mxu0
  %400 = vmatpush.msra.mxu0 0.0
  %401 = vmatpush.msra.mxu0 0.0
  %402 = vmatpush.msra.mxu0 0.0
  %403 = vmatpush.msra.mxu0 0.0
  %404 = vmatpush.msra.mxu0 0.0
  %405 = vmatpush.msra.mxu0 0.0
  %406 = vmatpush.msra.mxu0 0.0
  %407 = vmatpush.msra.mxu0 0.0
  %408 = vmatpush.msra.mxu0 0.0
  %409 = vmatpush.msra.mxu0 0.0
  %410 = vmatpush.msra.mxu0 0.0
  %411 = vmatpush.msra.mxu0 0.0
  %v412 = vand.u32 %v274, 4294901760
  %413 = vmatpush.msra.mxu0 %v412
  %v414 = vand.u32 %v273, 4294901760
  %415 = vmatpush.msra.mxu0 %v414
  %v416 = vand.u32 %v272, 4294901760
  %417 = vmatpush.msra.mxu0 %v416
  %v418 = vand.u32 %v271, 4294901760
  %419 = vmatpush.msra.mxu0 %v418
  %v420 = vand.u32 %v278, 4294901760
  %v421 = vsub.f32 %v278, %v420
  %v422 = vand.u32 %v421, 4294901760
  %423 = vmatmul.f32.gmra.mxu0 %v422
  %v424 = vpop.f32.mrf.mxu0
  %v425 = vadd.f32 %v393, %v424
  %v426 = vand.u32 %v281, 4294901760
  %v427 = vsub.f32 %v281, %v426
  %v428 = vand.u32 %v427, 4294901760
  %429 = vmatmul.f32.gmra.mxu0 %v428
  %v430 = vpop.f32.mrf.mxu0
  %v431 = vadd.f32 %v398, %v430
  %432 = vdwg.mxu0
  %433 = vmatpush.msra.mxu0 0.0
  %434 = vmatpush.msra.mxu0 0.0
  %435 = vmatpush.msra.mxu0 0.0
  %436 = vmatpush.msra.mxu0 0.0
  %437 = vmatpush.msra.mxu0 0.0
  %438 = vmatpush.msra.mxu0 0.0
  %439 = vmatpush.msra.mxu0 0.0
  %440 = vmatpush.msra.mxu0 0.0
  %441 = vmatpush.msra.mxu0 0.0
  %442 = vmatpush.msra.mxu0 0.0
  %443 = vmatpush.msra.mxu0 0.0
  %444 = vmatpush.msra.mxu0 0.0
  %v445 = vand.u32 %v274, 4294901760
  %v446 = vsub.f32 %v274, %v445
  %v447 = vand.u32 %v446, 4294901760
  %448 = vmatpush.msra.mxu0 %v447
  %v449 = vand.u32 %v273, 4294901760
  %v450 = vsub.f32 %v273, %v449
  %v451 = vand.u32 %v450, 4294901760
  %452 = vmatpush.msra.mxu0 %v451
  %v453 = vand.u32 %v272, 4294901760
  %v454 = vsub.f32 %v272, %v453
  %v455 = vand.u32 %v454, 4294901760
  %456 = vmatpush.msra.mxu0 %v455
  %v457 = vand.u32 %v271, 4294901760
  %v458 = vsub.f32 %v271, %v457
  %v459 = vand.u32 %v458, 4294901760
  %460 = vmatpush.msra.mxu0 %v459
  %v461 = vand.u32 %v278, 4294901760
  %462 = vmatmul.f32.gmra.mxu0 %v461
  %v463 = vpop.f32.mrf.mxu0
  %v464 = vadd.f32 %v425, %v463
  %v465 = vand.u32 %v281, 4294901760
  %466 = vmatmul.f32.gmra.mxu0 %v465
  %v467 = vpop.f32.mrf.mxu0
  %v468 = vadd.f32 %v431, %v467
  %469 = vdwg.mxu0
  %470 = vmatpush.msra.mxu0 0.0
  %471 = vmatpush.msra.mxu0 0.0
  %472 = vmatpush.msra.mxu0 0.0
  %473 = vmatpush.msra.mxu0 0.0
  %474 = vmatpush.msra.mxu0 0.0
  %475 = vmatpush.msra.mxu0 0.0
  %476 = vmatpush.msra.mxu0 0.0
  %477 = vmatpush.msra.mxu0 0.0
  %478 = vmatpush.msra.mxu0 0.0
  %479 = vmatpush.msra.mxu0 0.0
  %480 = vmatpush.msra.mxu0 0.0
  %481 = vmatpush.msra.mxu0 0.0
  %v482 = vand.u32 %v274, 4294901760
  %483 = vmatpush.msra.mxu0 %v482
  %v484 = vand.u32 %v273, 4294901760
  %485 = vmatpush.msra.mxu0 %v484
  %v486 = vand.u32 %v272, 4294901760
  %487 = vmatpush.msra.mxu0 %v486
  %v488 = vand.u32 %v271, 4294901760
  %489 = vmatpush.msra.mxu0 %v488
  %v490 = vand.u32 %v278, 4294901760
  %491 = vmatmul.f32.gmra.mxu0 %v490
  %v492 = vpop.f32.mrf.mxu0
  %v493 = vadd.f32 %v464, %v492
  %v494 = vand.u32 %v281, 4294901760
  %495 = vmatmul.f32.gmra.mxu0 %v494
  %v496 = vpop.f32.mrf.mxu0
  %v497 = vadd.f32 %v468, %v496
  %498 = vdwg.mxu0
  %v499 = vmax.f32 %v493, 0.0
  %v500 = vmax.f32 %v497, 0.0
  %v501 = vld [vmem:[%s2] sm:$0xff]
  %v502 = vld [vmem:[%s2 + $0x8] sm:$0xff]
  %v503 = vld [vmem:[%s5] sm:$0xff]
  %v504 = vld [vmem:[%s5 + $0x8] sm:$0xff]
  %v505 = vld [vmem:[%s5 + $0x10] sm:$0xff]
  %v506 = vld [vmem:[%s5 + $0x18] sm:$0xff]
  %v507 = vld [vmem:[%s6 + $0x2] sm:$0x1]
  %v508 = vperm.slane %v507, 0
  %v510 = vsel %vm44, %v501, 0
  %v513 = vsel %vm44, %v502, 0
  %515 = vmatpush.msra.mxu0 0.0
  %516 = vmatpush.msra.mxu0 0.0
  %517 = vmatpush.msra.mxu0 0.0
  %518 = vmatpush.msra.mxu0 0.0
  %519 = vmatpush.msra.mxu0 0.0
  %520 = vmatpush.msra.mxu0 0.0
  %521 = vmatpush.msra.mxu0 0.0
  %522 = vmatpush.msra.mxu0 0.0
  %523 = vmatpush.msra.mxu0 0.0
  %524 = vmatpush.msra.mxu0 0.0
  %525 = vmatpush.msra.mxu0 0.0
  %526 = vmatpush.msra.mxu0 0.0
  %v527 = vand.u32 %v506, 4294901760
  %528 = vmatpush.msra.mxu0 %v527
  %v529 = vand.u32 %v505, 4294901760
  %530 = vmatpush.msra.mxu0 %v529
  %v531 = vand.u32 %v504, 4294901760
  %532 = vmatpush.msra.mxu0 %v531
  %v533 = vand.u32 %v503, 4294901760
  %534 = vmatpush.msra.mxu0 %v533
  %v535 = vand.u32 %v510, 4294901760
  %v536 = vsub.f32 %v510, %v535
  %v537 = vand.u32 %v536, 4294901760
  %v538 = vsub.f32 %v536, %v537
  %v539 = vand.u32 %v538, 4294901760
  %540 = vmatmul.f32.gmra.mxu0 %v539
  %v541 = vpop.f32.mrf.mxu0
  %v542 = vadd.f32 %v508, %v541
  %v543 = vand.u32 %v513, 4294901760
  %v544 = vsub.f32 %v513, %v543
  %v545 = vand.u32 %v544, 4294901760
  %v546 = vsub.f32 %v544, %v545
  %v547 = vand.u32 %v546, 4294901760
  %548 = vmatmul.f32.gmra.mxu0 %v547
  %v549 = vpop.f32.mrf.mxu0
  %v550 = vadd.f32 %v508, %v549
  %551 = vdwg.mxu0
  %552 = vmatpush.msra.mxu0 0.0
  %553 = vmatpush.msra.mxu0 0.0
  %554 = vmatpush.msra.mxu0 0.0
  %555 = vmatpush.msra.mxu0 0.0
  %556 = vmatpush.msra.mxu0 0.0
  %557 = vmatpush.msra.mxu0 0.0
  %558 = vmatpush.msra.mxu0 0.0
  %559 = vmatpush.msra.mxu0 0.0
  %560 = vmatpush.msra.mxu0 0.0
  %561 = vmatpush.msra.mxu0 0.0
  %562 = vmatpush.msra.mxu0 0.0
  %563 = vmatpush.msra.mxu0 0.0
  %v564 = vand.u32 %v506, 4294901760
  %v565 = vsub.f32 %v506, %v564
  %v566 = vand.u32 %v565, 4294901760
  %v567 = vsub.f32 %v565, %v566
  %v568 = vand.u32 %v567, 4294901760
  %569 = vmatpush.msra.mxu0 %v568
  %v570 = vand.u32 %v505, 4294901760
  %v571 = vsub.f32 %v505, %v570
  %v572 = vand.u32 %v571, 4294901760
  %v573 = vsub.f32 %v571, %v572
  %v574 = vand.u32 %v573, 4294901760
  %575 = vmatpush.msra.mxu0 %v574
  %v576 = vand.u32 %v504, 4294901760
  %v577 = vsub.f32 %v504, %v576
  %v578 = vand.u32 %v577, 4294901760
  %v579 = vsub.f32 %v577, %v578
  %v580 = vand.u32 %v579, 4294901760
  %581 = vmatpush.msra.mxu0 %v580
  %v582 = vand.u32 %v503, 4294901760
  %v583 = vsub.f32 %v503, %v582
  %v584 = vand.u32 %v583, 4294901760
  %v585 = vsub.f32 %v583, %v584
  %v586 = vand.u32 %v585, 4294901760
  %587 = vmatpush.msra.mxu0 %v586
  %v588 = vand.u32 %v510, 4294901760
  %589 = vmatmul.f32.gmra.mxu0 %v588
  %v590 = vpop.f32.mrf.mxu0
  %v591 = vadd.f32 %v542, %v590
  %v592 = vand.u32 %v513, 4294901760
  %593 = vmatmul.f32.gmra.mxu0 %v592
  %v594 = vpop.f32.mrf.mxu0
  %v595 = vadd.f32 %v550, %v594
  %596 = vdwg.mxu0
  %597 = vmatpush.msra.mxu0 0.0
  %598 = vmatpush.msra.mxu0 0.0
  %599 = vmatpush.msra.mxu0 0.0
  %600 = vmatpush.msra.mxu0 0.0
  %601 = vmatpush.msra.mxu0 0.0
  %602 = vmatpush.msra.mxu0 0.0
  %603 = vmatpush.msra.mxu0 0.0
  %604 = vmatpush.msra.mxu0 0.0
  %605 = vmatpush.msra.mxu0 0.0
  %606 = vmatpush.msra.mxu0 0.0
  %607 = vmatpush.msra.mxu0 0.0
  %608 = vmatpush.msra.mxu0 0.0
  %v609 = vand.u32 %v506, 4294901760
  %v610 = vsub.f32 %v506, %v609
  %611 = vmatpush.msra.mxu0 %v610
  %v612 = vand.u32 %v505, 4294901760
  %v613 = vsub.f32 %v505, %v612
  %614 = vmatpush.msra.mxu0 %v613
  %v615 = vand.u32 %v504, 4294901760
  %v616 = vsub.f32 %v504, %v615
  %617 = vmatpush.msra.mxu0 %v616
  %v618 = vand.u32 %v503, 4294901760
  %v619 = vsub.f32 %v503, %v618
  %620 = vmatpush.msra.mxu0 %v619
  %v621 = vand.u32 %v510, 4294901760
  %v622 = vsub.f32 %v510, %v621
  %623 = vmatmul.f32.gmra.mxu0 %v622
  %v624 = vpop.f32.mrf.mxu0
  %v625 = vadd.f32 %v591, %v624
  %v626 = vand.u32 %v513, 4294901760
  %v627 = vsub.f32 %v513, %v626
  %628 = vmatmul.f32.gmra.mxu0 %v627
  %v629 = vpop.f32.mrf.mxu0
  %v630 = vadd.f32 %v595, %v629
  %631 = vdwg.mxu0
  %632 = vmatpush.msra.mxu0 0.0
  %633 = vmatpush.msra.mxu0 0.0
  %634 = vmatpush.msra.mxu0 0.0
  %635 = vmatpush.msra.mxu0 0.0
  %636 = vmatpush.msra.mxu0 0.0
  %637 = vmatpush.msra.mxu0 0.0
  %638 = vmatpush.msra.mxu0 0.0
  %639 = vmatpush.msra.mxu0 0.0
  %640 = vmatpush.msra.mxu0 0.0
  %641 = vmatpush.msra.mxu0 0.0
  %642 = vmatpush.msra.mxu0 0.0
  %643 = vmatpush.msra.mxu0 0.0
  %v644 = vand.u32 %v506, 4294901760
  %645 = vmatpush.msra.mxu0 %v644
  %v646 = vand.u32 %v505, 4294901760
  %647 = vmatpush.msra.mxu0 %v646
  %v648 = vand.u32 %v504, 4294901760
  %649 = vmatpush.msra.mxu0 %v648
  %v650 = vand.u32 %v503, 4294901760
  %651 = vmatpush.msra.mxu0 %v650
  %v652 = vand.u32 %v510, 4294901760
  %v653 = vsub.f32 %v510, %v652
  %v654 = vand.u32 %v653, 4294901760
  %655 = vmatmul.f32.gmra.mxu0 %v654
  %v656 = vpop.f32.mrf.mxu0
  %v657 = vadd.f32 %v625, %v656
  %v658 = vand.u32 %v513, 4294901760
  %v659 = vsub.f32 %v513, %v658
  %v660 = vand.u32 %v659, 4294901760
  %661 = vmatmul.f32.gmra.mxu0 %v660
  %v662 = vpop.f32.mrf.mxu0
  %v663 = vadd.f32 %v630, %v662
  %664 = vdwg.mxu0
  %665 = vmatpush.msra.mxu0 0.0
  %666 = vmatpush.msra.mxu0 0.0
  %667 = vmatpush.msra.mxu0 0.0
  %668 = vmatpush.msra.mxu0 0.0
  %669 = vmatpush.msra.mxu0 0.0
  %670 = vmatpush.msra.mxu0 0.0
  %671 = vmatpush.msra.mxu0 0.0
  %672 = vmatpush.msra.mxu0 0.0
  %673 = vmatpush.msra.mxu0 0.0
  %674 = vmatpush.msra.mxu0 0.0
  %675 = vmatpush.msra.mxu0 0.0
  %676 = vmatpush.msra.mxu0 0.0
  %v677 = vand.u32 %v506, 4294901760
  %v678 = vsub.f32 %v506, %v677
  %v679 = vand.u32 %v678, 4294901760
  %680 = vmatpush.msra.mxu0 %v679
  %v681 = vand.u32 %v505, 4294901760
  %v682 = vsub.f32 %v505, %v681
  %v683 = vand.u32 %v682, 4294901760
  %684 = vmatpush.msra.mxu0 %v683
  %v685 = vand.u32 %v504, 4294901760
  %v686 = vsub.f32 %v504, %v685
  %v687 = vand.u32 %v686, 4294901760
  %688 = vmatpush.msra.mxu0 %v687
  %v689 = vand.u32 %v503, 4294901760
  %v690 = vsub.f32 %v503, %v689
  %v691 = vand.u32 %v690, 4294901760
  %692 = vmatpush.msra.mxu0 %v691
  %v693 = vand.u32 %v510, 4294901760
  %694 = vmatmul.f32.gmra.mxu0 %v693
  %v695 = vpop.f32.mrf.mxu0
  %v696 = vadd.f32 %v657, %v695
  %v697 = vand.u32 %v513, 4294901760
  %698 = vmatmul.f32.gmra.mxu0 %v697
  %v699 = vpop.f32.mrf.mxu0
  %v700 = vadd.f32 %v663, %v699
  %701 = vdwg.mxu0
  %702 = vmatpush.msra.mxu0 0.0
  %703 = vmatpush.msra.mxu0 0.0
  %704 = vmatpush.msra.mxu0 0.0
  %705 = vmatpush.msra.mxu0 0.0
  %706 = vmatpush.msra.mxu0 0.0
  %707 = vmatpush.msra.mxu0 0.0
  %708 = vmatpush.msra.mxu0 0.0
  %709 = vmatpush.msra.mxu0 0.0
  %710 = vmatpush.msra.mxu0 0.0
  %711 = vmatpush.msra.mxu0 0.0
  %712 = vmatpush.msra.mxu0 0.0
  %713 = vmatpush.msra.mxu0 0.0
  %v714 = vand.u32 %v506, 4294901760
  %715 = vmatpush.msra.mxu0 %v714
  %v716 = vand.u32 %v505, 4294901760
  %717 = vmatpush.msra.mxu0 %v716
  %v718 = vand.u32 %v504, 4294901760
  %719 = vmatpush.msra.mxu0 %v718
  %v720 = vand.u32 %v503, 4294901760
  %721 = vmatpush.msra.mxu0 %v720
  %v722 = vand.u32 %v510, 4294901760
  %723 = vmatmul.f32.gmra.mxu0 %v722
  %v724 = vpop.f32.mrf.mxu0
  %v725 = vadd.f32 %v696, %v724
  %v726 = vand.u32 %v513, 4294901760
  %727 = vmatmul.f32.gmra.mxu0 %v726
  %v728 = vpop.f32.mrf.mxu0
  %v729 = vadd.f32 %v700, %v728
  %730 = vdwg.mxu0
  %v731 = vmax.f32 %v725, 0.0
  %v732 = vmax.f32 %v729, 0.0
  %v735 = vrot.slane %v500, 7
  %vm736 = vcmask 1041409
  %v737 = vsel %vm736, %v735, %v499
  %v739 = vrot.slane %v499, 1
  %v740 = vsel %vm736, %v500, %v739
  %741 = vrot.lane.b32.xlu0 %v740, 4
  %v742 = vpop.permute.xlu0 %741
  %v744 = vrot.slane %v499, 2
  %v745 = vrot.slane %v500, 1
  %v746 = vsel %vm736, %v745, %v744
  %747 = vrot.lane.b32.xlu0 %v746, 8
  %v748 = vpop.permute.xlu0 %747
  %v750 = vrot.slane %v499, 3
  %v751 = vrot.slane %v500, 2
  %v752 = vsel %vm736, %v751, %v750
  %753 = vrot.lane.b32.xlu0 %v752, 12
  %v754 = vpop.permute.xlu0 %753
  %v756 = vrot.slane %v499, 4
  %v757 = vrot.slane %v500, 3
  %v758 = vsel %vm736, %v757, %v756
  %759 = vrot.lane.b32.xlu0 %v758, 16
  %v760 = vpop.permute.xlu0 %759
  %v762 = vrot.slane %v499, 5
  %v763 = vrot.slane %v500, 4
  %v764 = vsel %vm736, %v763, %v762
  %765 = vrot.lane.b32.xlu0 %v764, 20
  %v766 = vpop.permute.xlu0 %765
  %v768 = vrot.slane %v499, 6
  %v769 = vrot.slane %v500, 5
  %v770 = vsel %vm736, %v769, %v768
  %771 = vrot.lane.b32.xlu0 %v770, 24
  %v772 = vpop.permute.xlu0 %771
  %v774 = vrot.slane %v499, 7
  %v775 = vrot.slane %v500, 6
  %v776 = vsel %vm736, %v775, %v774
  %777 = vrot.lane.b32.xlu0 %v776, 28
  %v778 = vpop.permute.xlu0 %777
  %vm780 = vcmask 31744
  %v781 = vsel %vm780, %v737, %v742
  %vm782 = vcmask 64512
  %v783 = vsel %vm782, %v781, %v748
  %vm784 = vcmask 97280
  %v785 = vsel %vm784, %v783, %v754
  %vm786 = vcmask 130048
  %v787 = vsel %vm786, %v785, %v760
  %vm788 = vcmask 162816
  %v789 = vsel %vm788, %v787, %v766
  %vm790 = vcmask 195584
  %v791 = vsel %vm790, %v789, %v772
  %vm792 = vcmask 228352
  %v793 = vsel %vm792, %v791, %v778
  %v796 = vrot.slane %v732, 7
  %v797 = vsel %vm736, %v796, %v731
  %v799 = vrot.slane %v731, 1
  %v800 = vsel %vm736, %v732, %v799
  %801 = vrot.lane.b32.xlu0 %v800, 4
  %v802 = vpop.permute.xlu0 %801
  %v804 = vrot.slane %v731, 2
  %v805 = vrot.slane %v732, 1
  %v806 = vsel %vm736, %v805, %v804
  %807 = vrot.lane.b32.xlu0 %v806, 8
  %v808 = vpop.permute.xlu0 %807
  %v810 = vrot.slane %v731, 3
  %v811 = vrot.slane %v732, 2
  %v812 = vsel %vm736, %v811, %v810
  %813 = vrot.lane.b32.xlu0 %v812, 12
  %v814 = vpop.permute.xlu0 %813
  %v816 = vrot.slane %v731, 4
  %v817 = vrot.slane %v732, 3
  %v818 = vsel %vm736, %v817, %v816
  %819 = vrot.lane.b32.xlu0 %v818, 16
  %v820 = vpop.permute.xlu0 %819
  %v822 = vrot.slane %v731, 5
  %v823 = vrot.slane %v732, 4
  %v824 = vsel %vm736, %v823, %v822
  %825 = vrot.lane.b32.xlu0 %v824, 20
  %v826 = vpop.permute.xlu0 %825
  %v828 = vrot.slane %v731, 6
  %v829 = vrot.slane %v732, 5
  %v830 = vsel %vm736, %v829, %v828
  %831 = vrot.lane.b32.xlu0 %v830, 24
  %v832 = vpop.permute.xlu0 %831
  %v834 = vrot.slane %v731, 7
  %v835 = vrot.slane %v732, 6
  %v836 = vsel %vm736, %v835, %v834
  %837 = vrot.lane.b32.xlu0 %v836, 28
  %v838 = vpop.permute.xlu0 %837
  %v840 = vsel %vm780, %v797, %v802
  %v841 = vsel %vm782, %v840, %v808
  %v842 = vsel %vm784, %v841, %v814
  %v843 = vsel %vm786, %v842, %v820
  %v844 = vsel %vm788, %v843, %v826
  %v845 = vsel %vm790, %v844, %v832
  %v846 = vsel %vm792, %v845, %v838
  %849 = vrot.lane.b32.xlu0 %v267, 4
  %v850 = vpop.permute.xlu0 %849
  %851 = vrot.lane.b32.xlu0 %v268, 4
  %v852 = vpop.permute.xlu0 %851
  %855 = vrot.lane.b32.xlu0 %v267, 8
  %v856 = vpop.permute.xlu0 %855
  %857 = vrot.lane.b32.xlu0 %v268, 8
  %v858 = vpop.permute.xlu0 %857
  %861 = vrot.lane.b32.xlu0 %v267, 12
  %v862 = vpop.permute.xlu0 %861
  %863 = vrot.lane.b32.xlu0 %v268, 12
  %v864 = vpop.permute.xlu0 %863
  %867 = vrot.lane.b32.xlu0 %v267, 16
  %v868 = vpop.permute.xlu0 %867
  %869 = vrot.lane.b32.xlu0 %v268, 16
  %v870 = vpop.permute.xlu0 %869
  %873 = vrot.lane.b32.xlu0 %v267, 20
  %v874 = vpop.permute.xlu0 %873
  %875 = vrot.lane.b32.xlu0 %v268, 20
  %v876 = vpop.permute.xlu0 %875
  %879 = vrot.lane.b32.xlu0 %v267, 24
  %v880 = vpop.permute.xlu0 %879
  %881 = vrot.lane.b32.xlu0 %v268, 24
  %v882 = vpop.permute.xlu0 %881
  %885 = vrot.lane.b32.xlu0 %v267, 28
  %v886 = vpop.permute.xlu0 %885
  %887 = vrot.lane.b32.xlu0 %v268, 28
  %v888 = vpop.permute.xlu0 %887
  %v891 = vsel %vm780, %v267, %v850
  %v892 = vsel %vm780, %v268, %v852
  %v893 = vsel %vm782, %v891, %v856
  %v894 = vsel %vm782, %v892, %v858
  %v895 = vsel %vm784, %v893, %v862
  %v896 = vsel %vm784, %v894, %v864
  %v897 = vsel %vm786, %v895, %v868
  %v898 = vsel %vm786, %v896, %v870
  %v899 = vsel %vm788, %v897, %v874
  %v900 = vsel %vm788, %v898, %v876
  %v901 = vsel %vm790, %v899, %v880
  %v902 = vsel %vm790, %v900, %v882
  %v903 = vsel %vm792, %v901, %v886
  %v904 = vsel %vm792, %v902, %v888
  %v906 = vrot.slane %v793, 1
  %v907 = vperm.slane %v793, 0
  %v908 = vperm.slane %v906, 0
  %v911 = vmul.f32 %v903, %v907
  %v912 = vmul.f32 %v904, %v908
  %v913 = vsel %vm44, %v911, -inf
  %914 = vmax.xlane.f32.xlu0 %v913
  %v915 = vpop.xlane.xlu0 %914
  %v916 = vsel %vm44, %v912, -inf
  %917 = vmax.xlane.f32.xlu0 %v916
  %v918 = vpop.xlane.xlu0 %917
  %v919 = vsub.f32 %v911, %v915
  %v920 = vsub.f32 %v912, %v918
  %v921 = vmul.f32 %v919, 1.442695
  %v922 = vpow.pop %v921
  %v923 = vmul.f32 %v920, 1.442695
  %v924 = vpow.pop %v923
  %v926 = vrot.slane %v846, 1
  %v927 = vperm.slane %v846, 0
  %v928 = vperm.slane %v926, 0
  %v931 = vmul.f32 %v922, %v927
  %v932 = vmul.f32 %v924, %v928
  %v933 = vld [vmem:[%s8] sm:$0xff]
  %v934 = vld [vmem:[%s8 + $0x8] sm:$0xff]
  %v935 = vld [vmem:[%s8 + $0x10] sm:$0xff]
  %v936 = vld [vmem:[%s8 + $0x18] sm:$0xff]
  %v938 = vsel %vm44, %v922, 0
  %v941 = vsel %vm44, %v924, 0
  %943 = vmatpush.msra.mxu0 0.0
  %944 = vmatpush.msra.mxu0 0.0
  %945 = vmatpush.msra.mxu0 0.0
  %946 = vmatpush.msra.mxu0 0.0
  %947 = vmatpush.msra.mxu0 0.0
  %948 = vmatpush.msra.mxu0 0.0
  %949 = vmatpush.msra.mxu0 0.0
  %950 = vmatpush.msra.mxu0 0.0
  %951 = vmatpush.msra.mxu0 0.0
  %952 = vmatpush.msra.mxu0 0.0
  %953 = vmatpush.msra.mxu0 0.0
  %954 = vmatpush.msra.mxu0 0.0
  %v955 = vand.u32 %v936, 4294901760
  %956 = vmatpush.msra.mxu0 %v955
  %v957 = vand.u32 %v935, 4294901760
  %958 = vmatpush.msra.mxu0 %v957
  %v959 = vand.u32 %v934, 4294901760
  %960 = vmatpush.msra.mxu0 %v959
  %v961 = vand.u32 %v933, 4294901760
  %962 = vmatpush.msra.mxu0 %v961
  %v963 = vand.u32 %v938, 4294901760
  %v964 = vsub.f32 %v938, %v963
  %v965 = vand.u32 %v964, 4294901760
  %v966 = vsub.f32 %v964, %v965
  %v967 = vand.u32 %v966, 4294901760
  %968 = vmatmul.f32.gmra.mxu0 %v967
  %v969 = vpop.f32.mrf.mxu0
  %v970 = vadd.f32 0.0, %v969
  %v971 = vand.u32 %v941, 4294901760
  %v972 = vsub.f32 %v941, %v971
  %v973 = vand.u32 %v972, 4294901760
  %v974 = vsub.f32 %v972, %v973
  %v975 = vand.u32 %v974, 4294901760
  %976 = vmatmul.f32.gmra.mxu0 %v975
  %v977 = vpop.f32.mrf.mxu0
  %v978 = vadd.f32 0.0, %v977
  %979 = vdwg.mxu0
  %980 = vmatpush.msra.mxu0 0.0
  %981 = vmatpush.msra.mxu0 0.0
  %982 = vmatpush.msra.mxu0 0.0
  %983 = vmatpush.msra.mxu0 0.0
  %984 = vmatpush.msra.mxu0 0.0
  %985 = vmatpush.msra.mxu0 0.0
  %986 = vmatpush.msra.mxu0 0.0
  %987 = vmatpush.msra.mxu0 0.0
  %988 = vmatpush.msra.mxu0 0.0
  %989 = vmatpush.msra.mxu0 0.0
  %990 = vmatpush.msra.mxu0 0.0
  %991 = vmatpush.msra.mxu0 0.0
  %v992 = vand.u32 %v936, 4294901760
  %v993 = vsub.f32 %v936, %v992
  %v994 = vand.u32 %v993, 4294901760
  %v995 = vsub.f32 %v993, %v994
  %v996 = vand.u32 %v995, 4294901760
  %997 = vmatpush.msra.mxu0 %v996
  %v998 = vand.u32 %v935, 4294901760
  %v999 = vsub.f32 %v935, %v998
  %v1000 = vand.u32 %v999, 4294901760
  %v1001 = vsub.f32 %v999, %v1000
  %v1002 = vand.u32 %v1001, 4294901760
  %1003 = vmatpush.msra.mxu0 %v1002
  %v1004 = vand.u32 %v934, 4294901760
  %v1005 = vsub.f32 %v934, %v1004
  %v1006 = vand.u32 %v1005, 4294901760
  %v1007 = vsub.f32 %v1005, %v1006
  %v1008 = vand.u32 %v1007, 4294901760
  %1009 = vmatpush.msra.mxu0 %v1008
  %v1010 = vand.u32 %v933, 4294901760
  %v1011 = vsub.f32 %v933, %v1010
  %v1012 = vand.u32 %v1011, 4294901760
  %v1013 = vsub.f32 %v1011, %v1012
  %v1014 = vand.u32 %v1013, 4294901760
  %1015 = vmatpush.msra.mxu0 %v1014
  %v1016 = vand.u32 %v938, 4294901760
  %1017 = vmatmul.f32.gmra.mxu0 %v1016
  %v1018 = vpop.f32.mrf.mxu0
  %v1019 = vadd.f32 %v970, %v1018
  %v1020 = vand.u32 %v941, 4294901760
  %1021 = vmatmul.f32.gmra.mxu0 %v1020
  %v1022 = vpop.f32.mrf.mxu0
  %v1023 = vadd.f32 %v978, %v1022
  %1024 = vdwg.mxu0
  %1025 = vmatpush.msra.mxu0 0.0
  %1026 = vmatpush.msra.mxu0 0.0
  %1027 = vmatpush.msra.mxu0 0.0
  %1028 = vmatpush.msra.mxu0 0.0
  %1029 = vmatpush.msra.mxu0 0.0
  %1030 = vmatpush.msra.mxu0 0.0
  %1031 = vmatpush.msra.mxu0 0.0
  %1032 = vmatpush.msra.mxu0 0.0
  %1033 = vmatpush.msra.mxu0 0.0
  %1034 = vmatpush.msra.mxu0 0.0
  %1035 = vmatpush.msra.mxu0 0.0
  %1036 = vmatpush.msra.mxu0 0.0
  %v1037 = vand.u32 %v936, 4294901760
  %v1038 = vsub.f32 %v936, %v1037
  %1039 = vmatpush.msra.mxu0 %v1038
  %v1040 = vand.u32 %v935, 4294901760
  %v1041 = vsub.f32 %v935, %v1040
  %1042 = vmatpush.msra.mxu0 %v1041
  %v1043 = vand.u32 %v934, 4294901760
  %v1044 = vsub.f32 %v934, %v1043
  %1045 = vmatpush.msra.mxu0 %v1044
  %v1046 = vand.u32 %v933, 4294901760
  %v1047 = vsub.f32 %v933, %v1046
  %1048 = vmatpush.msra.mxu0 %v1047
  %v1049 = vand.u32 %v938, 4294901760
  %v1050 = vsub.f32 %v938, %v1049
  %1051 = vmatmul.f32.gmra.mxu0 %v1050
  %v1052 = vpop.f32.mrf.mxu0
  %v1053 = vadd.f32 %v1019, %v1052
  %v1054 = vand.u32 %v941, 4294901760
  %v1055 = vsub.f32 %v941, %v1054
  %1056 = vmatmul.f32.gmra.mxu0 %v1055
  %v1057 = vpop.f32.mrf.mxu0
  %v1058 = vadd.f32 %v1023, %v1057
  %1059 = vdwg.mxu0
  %1060 = vmatpush.msra.mxu0 0.0
  %1061 = vmatpush.msra.mxu0 0.0
  %1062 = vmatpush.msra.mxu0 0.0
  %1063 = vmatpush.msra.mxu0 0.0
  %1064 = vmatpush.msra.mxu0 0.0
  %1065 = vmatpush.msra.mxu0 0.0
  %1066 = vmatpush.msra.mxu0 0.0
  %1067 = vmatpush.msra.mxu0 0.0
  %1068 = vmatpush.msra.mxu0 0.0
  %1069 = vmatpush.msra.mxu0 0.0
  %1070 = vmatpush.msra.mxu0 0.0
  %1071 = vmatpush.msra.mxu0 0.0
  %v1072 = vand.u32 %v936, 4294901760
  %1073 = vmatpush.msra.mxu0 %v1072
  %v1074 = vand.u32 %v935, 4294901760
  %1075 = vmatpush.msra.mxu0 %v1074
  %v1076 = vand.u32 %v934, 4294901760
  %1077 = vmatpush.msra.mxu0 %v1076
  %v1078 = vand.u32 %v933, 4294901760
  %1079 = vmatpush.msra.mxu0 %v1078
  %v1080 = vand.u32 %v938, 4294901760
  %v1081 = vsub.f32 %v938, %v1080
  %v1082 = vand.u32 %v1081, 4294901760
  %1083 = vmatmul.f32.gmra.mxu0 %v1082
  %v1084 = vpop.f32.mrf.mxu0
  %v1085 = vadd.f32 %v1053, %v1084
  %v1086 = vand.u32 %v941, 4294901760
  %v1087 = vsub.f32 %v941, %v1086
  %v1088 = vand.u32 %v1087, 4294901760
  %1089 = vmatmul.f32.gmra.mxu0 %v1088
  %v1090 = vpop.f32.mrf.mxu0
  %v1091 = vadd.f32 %v1058, %v1090
  %1092 = vdwg.mxu0
  %1093 = vmatpush.msra.mxu0 0.0
  %1094 = vmatpush.msra.mxu0 0.0
  %1095 = vmatpush.msra.mxu0 0.0
  %1096 = vmatpush.msra.mxu0 0.0
  %1097 = vmatpush.msra.mxu0 0.0
  %1098 = vmatpush.msra.mxu0 0.0
  %1099 = vmatpush.msra.mxu0 0.0
  %1100 = vmatpush.msra.mxu0 0.0
  %1101 = vmatpush.msra.mxu0 0.0
  %1102 = vmatpush.msra.mxu0 0.0
  %1103 = vmatpush.msra.mxu0 0.0
  %1104 = vmatpush.msra.mxu0 0.0
  %v1105 = vand.u32 %v936, 4294901760
  %v1106 = vsub.f32 %v936, %v1105
  %v1107 = vand.u32 %v1106, 4294901760
  %1108 = vmatpush.msra.mxu0 %v1107
  %v1109 = vand.u32 %v935, 4294901760
  %v1110 = vsub.f32 %v935, %v1109
  %v1111 = vand.u32 %v1110, 4294901760
  %1112 = vmatpush.msra.mxu0 %v1111
  %v1113 = vand.u32 %v934, 4294901760
  %v1114 = vsub.f32 %v934, %v1113
  %v1115 = vand.u32 %v1114, 4294901760
  %1116 = vmatpush.msra.mxu0 %v1115
  %v1117 = vand.u32 %v933, 4294901760
  %v1118 = vsub.f32 %v933, %v1117
  %v1119 = vand.u32 %v1118, 4294901760
  %1120 = vmatpush.msra.mxu0 %v1119
  %v1121 = vand.u32 %v938, 4294901760
  %1122 = vmatmul.f32.gmra.mxu0 %v1121
  %v1123 = vpop.f32.mrf.mxu0
  %v1124 = vadd.f32 %v1085, %v1123
  %v1125 = vand.u32 %v941, 4294901760
  %1126 = vmatmul.f32.gmra.mxu0 %v1125
  %v1127 = vpop.f32.mrf.mxu0
  %v1128 = vadd.f32 %v1091, %v1127
  %1129 = vdwg.mxu0
  %1130 = vmatpush.msra.mxu0 0.0
  %1131 = vmatpush.msra.mxu0 0.0
  %1132 = vmatpush.msra.mxu0 0.0
  %1133 = vmatpush.msra.mxu0 0.0
  %1134 = vmatpush.msra.mxu0 0.0
  %1135 = vmatpush.msra.mxu0 0.0
  %1136 = vmatpush.msra.mxu0 0.0
  %1137 = vmatpush.msra.mxu0 0.0
  %1138 = vmatpush.msra.mxu0 0.0
  %1139 = vmatpush.msra.mxu0 0.0
  %1140 = vmatpush.msra.mxu0 0.0
  %1141 = vmatpush.msra.mxu0 0.0
  %v1142 = vand.u32 %v936, 4294901760
  %1143 = vmatpush.msra.mxu0 %v1142
  %v1144 = vand.u32 %v935, 4294901760
  %1145 = vmatpush.msra.mxu0 %v1144
  %v1146 = vand.u32 %v934, 4294901760
  %1147 = vmatpush.msra.mxu0 %v1146
  %v1148 = vand.u32 %v933, 4294901760
  %1149 = vmatpush.msra.mxu0 %v1148
  %v1150 = vand.u32 %v938, 4294901760
  %1151 = vmatmul.f32.gmra.mxu0 %v1150
  %v1152 = vpop.f32.mrf.mxu0
  %v1153 = vadd.f32 %v1124, %v1152
  %v1154 = vand.u32 %v941, 4294901760
  %1155 = vmatmul.f32.gmra.mxu0 %v1154
  %v1156 = vpop.f32.mrf.mxu0
  %v1157 = vadd.f32 %v1128, %v1156
  %1158 = vdwg.mxu0
  %v1160 = vsel %vm44, %v931, 0
  %v1163 = vsel %vm44, %v932, 0
  %1165 = vmatpush.msra.mxu0 0.0
  %1166 = vmatpush.msra.mxu0 0.0
  %1167 = vmatpush.msra.mxu0 0.0
  %1168 = vmatpush.msra.mxu0 0.0
  %1169 = vmatpush.msra.mxu0 0.0
  %1170 = vmatpush.msra.mxu0 0.0
  %1171 = vmatpush.msra.mxu0 0.0
  %1172 = vmatpush.msra.mxu0 0.0
  %1173 = vmatpush.msra.mxu0 0.0
  %1174 = vmatpush.msra.mxu0 0.0
  %1175 = vmatpush.msra.mxu0 0.0
  %1176 = vmatpush.msra.mxu0 0.0
  %v1177 = vand.u32 %v936, 4294901760
  %1178 = vmatpush.msra.mxu0 %v1177
  %v1179 = vand.u32 %v935, 4294901760
  %1180 = vmatpush.msra.mxu0 %v1179
  %v1181 = vand.u32 %v934, 4294901760
  %1182 = vmatpush.msra.mxu0 %v1181
  %v1183 = vand.u32 %v933, 4294901760
  %1184 = vmatpush.msra.mxu0 %v1183
  %v1185 = vand.u32 %v1160, 4294901760
  %v1186 = vsub.f32 %v1160, %v1185
  %v1187 = vand.u32 %v1186, 4294901760
  %v1188 = vsub.f32 %v1186, %v1187
  %v1189 = vand.u32 %v1188, 4294901760
  %1190 = vmatmul.f32.gmra.mxu0 %v1189
  %v1191 = vpop.f32.mrf.mxu0
  %v1192 = vadd.f32 0.0, %v1191
  %v1193 = vand.u32 %v1163, 4294901760
  %v1194 = vsub.f32 %v1163, %v1193
  %v1195 = vand.u32 %v1194, 4294901760
  %v1196 = vsub.f32 %v1194, %v1195
  %v1197 = vand.u32 %v1196, 4294901760
  %1198 = vmatmul.f32.gmra.mxu0 %v1197
  %v1199 = vpop.f32.mrf.mxu0
  %v1200 = vadd.f32 0.0, %v1199
  %1201 = vdwg.mxu0
  %1202 = vmatpush.msra.mxu0 0.0
  %1203 = vmatpush.msra.mxu0 0.0
  %1204 = vmatpush.msra.mxu0 0.0
  %1205 = vmatpush.msra.mxu0 0.0
  %1206 = vmatpush.msra.mxu0 0.0
  %1207 = vmatpush.msra.mxu0 0.0
  %1208 = vmatpush.msra.mxu0 0.0
  %1209 = vmatpush.msra.mxu0 0.0
  %1210 = vmatpush.msra.mxu0 0.0
  %1211 = vmatpush.msra.mxu0 0.0
  %1212 = vmatpush.msra.mxu0 0.0
  %1213 = vmatpush.msra.mxu0 0.0
  %v1214 = vand.u32 %v936, 4294901760
  %v1215 = vsub.f32 %v936, %v1214
  %v1216 = vand.u32 %v1215, 4294901760
  %v1217 = vsub.f32 %v1215, %v1216
  %v1218 = vand.u32 %v1217, 4294901760
  %1219 = vmatpush.msra.mxu0 %v1218
  %v1220 = vand.u32 %v935, 4294901760
  %v1221 = vsub.f32 %v935, %v1220
  %v1222 = vand.u32 %v1221, 4294901760
  %v1223 = vsub.f32 %v1221, %v1222
  %v1224 = vand.u32 %v1223, 4294901760
  %1225 = vmatpush.msra.mxu0 %v1224
  %v1226 = vand.u32 %v934, 4294901760
  %v1227 = vsub.f32 %v934, %v1226
  %v1228 = vand.u32 %v1227, 4294901760
  %v1229 = vsub.f32 %v1227, %v1228
  %v1230 = vand.u32 %v1229, 4294901760
  %1231 = vmatpush.msra.mxu0 %v1230
  %v1232 = vand.u32 %v933, 4294901760
  %v1233 = vsub.f32 %v933, %v1232
  %v1234 = vand.u32 %v1233, 4294901760
  %v1235 = vsub.f32 %v1233, %v1234
  %v1236 = vand.u32 %v1235, 4294901760
  %1237 = vmatpush.msra.mxu0 %v1236
  %v1238 = vand.u32 %v1160, 4294901760
  %1239 = vmatmul.f32.gmra.mxu0 %v1238
  %v1240 = vpop.f32.mrf.mxu0
  %v1241 = vadd.f32 %v1192, %v1240
  %v1242 = vand.u32 %v1163, 4294901760
  %1243 = vmatmul.f32.gmra.mxu0 %v1242
  %v1244 = vpop.f32.mrf.mxu0
  %v1245 = vadd.f32 %v1200, %v1244
  %1246 = vdwg.mxu0
  %1247 = vmatpush.msra.mxu0 0.0
  %1248 = vmatpush.msra.mxu0 0.0
  %1249 = vmatpush.msra.mxu0 0.0
  %1250 = vmatpush.msra.mxu0 0.0
  %1251 = vmatpush.msra.mxu0 0.0
  %1252 = vmatpush.msra.mxu0 0.0
  %1253 = vmatpush.msra.mxu0 0.0
  %1254 = vmatpush.msra.mxu0 0.0
  %1255 = vmatpush.msra.mxu0 0.0
  %1256 = vmatpush.msra.mxu0 0.0
  %1257 = vmatpush.msra.mxu0 0.0
  %1258 = vmatpush.msra.mxu0 0.0
  %v1259 = vand.u32 %v936, 4294901760
  %v1260 = vsub.f32 %v936, %v1259
  %1261 = vmatpush.msra.mxu0 %v1260
  %v1262 = vand.u32 %v935, 4294901760
  %v1263 = vsub.f32 %v935, %v1262
  %1264 = vmatpush.msra.mxu0 %v1263
  %v1265 = vand.u32 %v934, 4294901760
  %v1266 = vsub.f32 %v934, %v1265
  %1267 = vmatpush.msra.mxu0 %v1266
  %v1268 = vand.u32 %v933, 4294901760
  %v1269 = vsub.f32 %v933, %v1268
  %1270 = vmatpush.msra.mxu0 %v1269
  %v1271 = vand.u32 %v1160, 4294901760
  %v1272 = vsub.f32 %v1160, %v1271
  %1273 = vmatmul.f32.gmra.mxu0 %v1272
  %v1274 = vpop.f32.mrf.mxu0
  %v1275 = vadd.f32 %v1241, %v1274
  %v1276 = vand.u32 %v1163, 4294901760
  %v1277 = vsub.f32 %v1163, %v1276
  %1278 = vmatmul.f32.gmra.mxu0 %v1277
  %v1279 = vpop.f32.mrf.mxu0
  %v1280 = vadd.f32 %v1245, %v1279
  %1281 = vdwg.mxu0
  %1282 = vmatpush.msra.mxu0 0.0
  %1283 = vmatpush.msra.mxu0 0.0
  %1284 = vmatpush.msra.mxu0 0.0
  %1285 = vmatpush.msra.mxu0 0.0
  %1286 = vmatpush.msra.mxu0 0.0
  %1287 = vmatpush.msra.mxu0 0.0
  %1288 = vmatpush.msra.mxu0 0.0
  %1289 = vmatpush.msra.mxu0 0.0
  %1290 = vmatpush.msra.mxu0 0.0
  %1291 = vmatpush.msra.mxu0 0.0
  %1292 = vmatpush.msra.mxu0 0.0
  %1293 = vmatpush.msra.mxu0 0.0
  %v1294 = vand.u32 %v936, 4294901760
  %1295 = vmatpush.msra.mxu0 %v1294
  %v1296 = vand.u32 %v935, 4294901760
  %1297 = vmatpush.msra.mxu0 %v1296
  %v1298 = vand.u32 %v934, 4294901760
  %1299 = vmatpush.msra.mxu0 %v1298
  %v1300 = vand.u32 %v933, 4294901760
  %1301 = vmatpush.msra.mxu0 %v1300
  %v1302 = vand.u32 %v1160, 4294901760
  %v1303 = vsub.f32 %v1160, %v1302
  %v1304 = vand.u32 %v1303, 4294901760
  %1305 = vmatmul.f32.gmra.mxu0 %v1304
  %v1306 = vpop.f32.mrf.mxu0
  %v1307 = vadd.f32 %v1275, %v1306
  %v1308 = vand.u32 %v1163, 4294901760
  %v1309 = vsub.f32 %v1163, %v1308
  %v1310 = vand.u32 %v1309, 4294901760
  %1311 = vmatmul.f32.gmra.mxu0 %v1310
  %v1312 = vpop.f32.mrf.mxu0
  %v1313 = vadd.f32 %v1280, %v1312
  %1314 = vdwg.mxu0
  %1315 = vmatpush.msra.mxu0 0.0
  %1316 = vmatpush.msra.mxu0 0.0
  %1317 = vmatpush.msra.mxu0 0.0
  %1318 = vmatpush.msra.mxu0 0.0
  %1319 = vmatpush.msra.mxu0 0.0
  %1320 = vmatpush.msra.mxu0 0.0
  %1321 = vmatpush.msra.mxu0 0.0
  %1322 = vmatpush.msra.mxu0 0.0
  %1323 = vmatpush.msra.mxu0 0.0
  %1324 = vmatpush.msra.mxu0 0.0
  %1325 = vmatpush.msra.mxu0 0.0
  %1326 = vmatpush.msra.mxu0 0.0
  %v1327 = vand.u32 %v936, 4294901760
  %v1328 = vsub.f32 %v936, %v1327
  %v1329 = vand.u32 %v1328, 4294901760
  %1330 = vmatpush.msra.mxu0 %v1329
  %v1331 = vand.u32 %v935, 4294901760
  %v1332 = vsub.f32 %v935, %v1331
  %v1333 = vand.u32 %v1332, 4294901760
  %1334 = vmatpush.msra.mxu0 %v1333
  %v1335 = vand.u32 %v934, 4294901760
  %v1336 = vsub.f32 %v934, %v1335
  %v1337 = vand.u32 %v1336, 4294901760
  %1338 = vmatpush.msra.mxu0 %v1337
  %v1339 = vand.u32 %v933, 4294901760
  %v1340 = vsub.f32 %v933, %v1339
  %v1341 = vand.u32 %v1340, 4294901760
  %1342 = vmatpush.msra.mxu0 %v1341
  %v1343 = vand.u32 %v1160, 4294901760
  %1344 = vmatmul.f32.gmra.mxu0 %v1343
  %v1345 = vpop.f32.mrf.mxu0
  %v1346 = vadd.f32 %v1307, %v1345
  %v1347 = vand.u32 %v1163, 4294901760
  %1348 = vmatmul.f32.gmra.mxu0 %v1347
  %v1349 = vpop.f32.mrf.mxu0
  %v1350 = vadd.f32 %v1313, %v1349
  %1351 = vdwg.mxu0
  %1352 = vmatpush.msra.mxu0 0.0
  %1353 = vmatpush.msra.mxu0 0.0
  %1354 = vmatpush.msra.mxu0 0.0
  %1355 = vmatpush.msra.mxu0 0.0
  %1356 = vmatpush.msra.mxu0 0.0
  %1357 = vmatpush.msra.mxu0 0.0
  %1358 = vmatpush.msra.mxu0 0.0
  %1359 = vmatpush.msra.mxu0 0.0
  %1360 = vmatpush.msra.mxu0 0.0
  %1361 = vmatpush.msra.mxu0 0.0
  %1362 = vmatpush.msra.mxu0 0.0
  %1363 = vmatpush.msra.mxu0 0.0
  %v1364 = vand.u32 %v936, 4294901760
  %1365 = vmatpush.msra.mxu0 %v1364
  %v1366 = vand.u32 %v935, 4294901760
  %1367 = vmatpush.msra.mxu0 %v1366
  %v1368 = vand.u32 %v934, 4294901760
  %1369 = vmatpush.msra.mxu0 %v1368
  %v1370 = vand.u32 %v933, 4294901760
  %1371 = vmatpush.msra.mxu0 %v1370
  %v1372 = vand.u32 %v1160, 4294901760
  %1373 = vmatmul.f32.gmra.mxu0 %v1372
  %v1374 = vpop.f32.mrf.mxu0
  %v1375 = vadd.f32 %v1346, %v1374
  %v1376 = vand.u32 %v1163, 4294901760
  %1377 = vmatmul.f32.gmra.mxu0 %v1376
  %v1378 = vpop.f32.mrf.mxu0
  %v1379 = vadd.f32 %v1350, %v1378
  %1380 = vdwg.mxu0
  %v1381 = vrcp.pop %v1153
  %v1382 = vmul.f32 %v1153, %v1381
  %v1383 = vsub.f32 1.0, %v1382
  %v1384 = vmul.f32 %v1381, %v1383
  %v1385 = vadd.f32 %v1381, %v1384
  %vm1386 = vweird.f32 %v1153
  %vm1387 = vweird.f32 %v1381
  %vm1388 = vmor %vm1386, %vm1387
  %v1389 = vsel %vm1388, %v1381, %v1385
  %v1390 = vand.u32 2147483647, %v1153
  %vm1391 = vcmp.eq.f32.partialorder %v1390, 8.507059e+37
  %v1392 = vand.u32 %v1153, 2147483648
  %v1393 = vor.u32 1.1754944e-38, %v1392
  %v1394 = vsel %vm1391, %v1393, %v1389
  %v1395 = vrcp.pop %v1157
  %v1396 = vmul.f32 %v1157, %v1395
  %v1397 = vsub.f32 1.0, %v1396
  %v1398 = vmul.f32 %v1395, %v1397
  %v1399 = vadd.f32 %v1395, %v1398
  %vm1400 = vweird.f32 %v1157
  %vm1401 = vweird.f32 %v1395
  %vm1402 = vmor %vm1400, %vm1401
  %v1403 = vsel %vm1402, %v1395, %v1399
  %v1404 = vand.u32 2147483647, %v1157
  %vm1405 = vcmp.eq.f32.partialorder %v1404, 8.507059e+37
  %v1406 = vand.u32 %v1157, 2147483648
  %v1407 = vor.u32 1.1754944e-38, %v1406
  %v1408 = vsel %vm1405, %v1407, %v1403
  %v1409 = vmul.f32 %v1375, %v1394
  %v1410 = vmul.f32 %v1379, %v1408
  %v1411 = vld [vmem:[%s7] sm:$0x1]
  %s1412 = sld [smem:[#allocation2]]
  %v1413 = vstv %s1412
  %v1415 = vsel %vm780, %v1411, 0
  %v1418 = vsel %vm780, %v1409, 0
  %v1421 = vsel %vm780, %v1410, 0
  %1423 = vmatpush.xpose.msra.mxu0 0.0
  %1424 = vmatpush.xpose.msra.mxu0 0.0
  %1425 = vmatpush.xpose.msra.mxu0 0.0
  %1426 = vmatpush.xpose.msra.mxu0 0.0
  %1427 = vmatpush.xpose.msra.mxu0 0.0
  %1428 = vmatpush.xpose.msra.mxu0 0.0
  %1429 = vmatpush.xpose.msra.mxu0 0.0
  %1430 = vmatpush.xpose.msra.mxu0 0.0
  %1431 = vmatpush.xpose.msra.mxu0 0.0
  %1432 = vmatpush.xpose.msra.mxu0 0.0
  %1433 = vmatpush.xpose.msra.mxu0 0.0
  %1434 = vmatpush.xpose.msra.mxu0 0.0
  %1435 = vmatpush.xpose.msra.mxu0 0.0
  %1436 = vmatpush.xpose.msra.mxu0 0.0
  %v1437 = vand.u32 %v1421, 4294901760
  %1438 = vmatpush.xpose.msra.mxu0 %v1437
  %v1439 = vand.u32 %v1418, 4294901760
  %1440 = vmatpush.xpose.msra.mxu0 %v1439
  %v1441 = vand.u32 %v1415, 4294901760
  %v1442 = vsub.f32 %v1415, %v1441
  %v1443 = vand.u32 %v1442, 4294901760
  %v1444 = vsub.f32 %v1442, %v1443
  %v1445 = vand.u32 %v1444, 4294901760
  %1446 = vmatmul.f32.gmra.mxu0 %v1445
  %v1447 = vpop.f32.mrf.mxu0
  %v1448 = vadd.f32 %v1413, %v1447
  %1449 = vdwg.mxu0
  %1450 = vmatpush.xpose.msra.mxu0 0.0
  %1451 = vmatpush.xpose.msra.mxu0 0.0
  %1452 = vmatpush.xpose.msra.mxu0 0.0
  %1453 = vmatpush.xpose.msra.mxu0 0.0
  %1454 = vmatpush.xpose.msra.mxu0 0.0
  %1455 = vmatpush.xpose.msra.mxu0 0.0
  %1456 = vmatpush.xpose.msra.mxu0 0.0
  %1457 = vmatpush.xpose.msra.mxu0 0.0
  %1458 = vmatpush.xpose.msra.mxu0 0.0
  %1459 = vmatpush.xpose.msra.mxu0 0.0
  %1460 = vmatpush.xpose.msra.mxu0 0.0
  %1461 = vmatpush.xpose.msra.mxu0 0.0
  %1462 = vmatpush.xpose.msra.mxu0 0.0
  %1463 = vmatpush.xpose.msra.mxu0 0.0
  %v1464 = vand.u32 %v1421, 4294901760
  %v1465 = vsub.f32 %v1421, %v1464
  %v1466 = vand.u32 %v1465, 4294901760
  %v1467 = vsub.f32 %v1465, %v1466
  %v1468 = vand.u32 %v1467, 4294901760
  %1469 = vmatpush.xpose.msra.mxu0 %v1468
  %v1470 = vand.u32 %v1418, 4294901760
  %v1471 = vsub.f32 %v1418, %v1470
  %v1472 = vand.u32 %v1471, 4294901760
  %v1473 = vsub.f32 %v1471, %v1472
  %v1474 = vand.u32 %v1473, 4294901760
  %1475 = vmatpush.xpose.msra.mxu0 %v1474
  %v1476 = vand.u32 %v1415, 4294901760
  %1477 = vmatmul.f32.gmra.mxu0 %v1476
  %v1478 = vpop.f32.mrf.mxu0
  %v1479 = vadd.f32 %v1448, %v1478
  %1480 = vdwg.mxu0
  %1481 = vmatpush.xpose.msra.mxu0 0.0
  %1482 = vmatpush.xpose.msra.mxu0 0.0
  %1483 = vmatpush.xpose.msra.mxu0 0.0
  %1484 = vmatpush.xpose.msra.mxu0 0.0
  %1485 = vmatpush.xpose.msra.mxu0 0.0
  %1486 = vmatpush.xpose.msra.mxu0 0.0
  %1487 = vmatpush.xpose.msra.mxu0 0.0
  %1488 = vmatpush.xpose.msra.mxu0 0.0
  %1489 = vmatpush.xpose.msra.mxu0 0.0
  %1490 = vmatpush.xpose.msra.mxu0 0.0
  %1491 = vmatpush.xpose.msra.mxu0 0.0
  %1492 = vmatpush.xpose.msra.mxu0 0.0
  %1493 = vmatpush.xpose.msra.mxu0 0.0
  %1494 = vmatpush.xpose.msra.mxu0 0.0
  %v1495 = vand.u32 %v1421, 4294901760
  %v1496 = vsub.f32 %v1421, %v1495
  %1497 = vmatpush.xpose.msra.mxu0 %v1496
  %v1498 = vand.u32 %v1418, 4294901760
  %v1499 = vsub.f32 %v1418, %v1498
  %1500 = vmatpush.xpose.msra.mxu0 %v1499
  %v1501 = vand.u32 %v1415, 4294901760
  %v1502 = vsub.f32 %v1415, %v1501
  %1503 = vmatmul.f32.gmra.mxu0 %v1502
  %v1504 = vpop.f32.mrf.mxu0
  %v1505 = vadd.f32 %v1479, %v1504
  %1506 = vdwg.mxu0
  %1507 = vmatpush.xpose.msra.mxu0 0.0
  %1508 = vmatpush.xpose.msra.mxu0 0.0
  %1509 = vmatpush.xpose.msra.mxu0 0.0
  %1510 = vmatpush.xpose.msra.mxu0 0.0
  %1511 = vmatpush.xpose.msra.mxu0 0.0
  %1512 = vmatpush.xpose.msra.mxu0 0.0
  %1513 = vmatpush.xpose.msra.mxu0 0.0
  %1514 = vmatpush.xpose.msra.mxu0 0.0
  %1515 = vmatpush.xpose.msra.mxu0 0.0
  %1516 = vmatpush.xpose.msra.mxu0 0.0
  %1517 = vmatpush.xpose.msra.mxu0 0.0
  %1518 = vmatpush.xpose.msra.mxu0 0.0
  %1519 = vmatpush.xpose.msra.mxu0 0.0
  %1520 = vmatpush.xpose.msra.mxu0 0.0
  %v1521 = vand.u32 %v1421, 4294901760
  %1522 = vmatpush.xpose.msra.mxu0 %v1521
  %v1523 = vand.u32 %v1418, 4294901760
  %1524 = vmatpush.xpose.msra.mxu0 %v1523
  %v1525 = vand.u32 %v1415, 4294901760
  %v1526 = vsub.f32 %v1415, %v1525
  %v1527 = vand.u32 %v1526, 4294901760
  %1528 = vmatmul.f32.gmra.mxu0 %v1527
  %v1529 = vpop.f32.mrf.mxu0
  %v1530 = vadd.f32 %v1505, %v1529
  %1531 = vdwg.mxu0
  %1532 = vmatpush.xpose.msra.mxu0 0.0
  %1533 = vmatpush.xpose.msra.mxu0 0.0
  %1534 = vmatpush.xpose.msra.mxu0 0.0
  %1535 = vmatpush.xpose.msra.mxu0 0.0
  %1536 = vmatpush.xpose.msra.mxu0 0.0
  %1537 = vmatpush.xpose.msra.mxu0 0.0
  %1538 = vmatpush.xpose.msra.mxu0 0.0
  %1539 = vmatpush.xpose.msra.mxu0 0.0
  %1540 = vmatpush.xpose.msra.mxu0 0.0
  %1541 = vmatpush.xpose.msra.mxu0 0.0
  %1542 = vmatpush.xpose.msra.mxu0 0.0
  %1543 = vmatpush.xpose.msra.mxu0 0.0
  %1544 = vmatpush.xpose.msra.mxu0 0.0
  %1545 = vmatpush.xpose.msra.mxu0 0.0
  %v1546 = vand.u32 %v1421, 4294901760
  %v1547 = vsub.f32 %v1421, %v1546
  %v1548 = vand.u32 %v1547, 4294901760
  %1549 = vmatpush.xpose.msra.mxu0 %v1548
  %v1550 = vand.u32 %v1418, 4294901760
  %v1551 = vsub.f32 %v1418, %v1550
  %v1552 = vand.u32 %v1551, 4294901760
  %1553 = vmatpush.xpose.msra.mxu0 %v1552
  %v1554 = vand.u32 %v1415, 4294901760
  %1555 = vmatmul.f32.gmra.mxu0 %v1554
  %v1556 = vpop.f32.mrf.mxu0
  %v1557 = vadd.f32 %v1530, %v1556
  %1558 = vdwg.mxu0
  %1559 = vmatpush.xpose.msra.mxu0 0.0
  %1560 = vmatpush.xpose.msra.mxu0 0.0
  %1561 = vmatpush.xpose.msra.mxu0 0.0
  %1562 = vmatpush.xpose.msra.mxu0 0.0
  %1563 = vmatpush.xpose.msra.mxu0 0.0
  %1564 = vmatpush.xpose.msra.mxu0 0.0
  %1565 = vmatpush.xpose.msra.mxu0 0.0
  %1566 = vmatpush.xpose.msra.mxu0 0.0
  %1567 = vmatpush.xpose.msra.mxu0 0.0
  %1568 = vmatpush.xpose.msra.mxu0 0.0
  %1569 = vmatpush.xpose.msra.mxu0 0.0
  %1570 = vmatpush.xpose.msra.mxu0 0.0
  %1571 = vmatpush.xpose.msra.mxu0 0.0
  %1572 = vmatpush.xpose.msra.mxu0 0.0
  %v1573 = vand.u32 %v1421, 4294901760
  %1574 = vmatpush.xpose.msra.mxu0 %v1573
  %v1575 = vand.u32 %v1418, 4294901760
  %1576 = vmatpush.xpose.msra.mxu0 %v1575
  %v1577 = vand.u32 %v1415, 4294901760
  %1578 = vmatmul.f32.gmra.mxu0 %v1577
  %v1579 = vpop.f32.mrf.mxu0
  %v1580 = vadd.f32 %v1557, %v1579
  %1581 = vdwg.mxu0
  %vm1582 = vcmask 122880
  %1583 = vst.msk [vmem:[%s10] sm:$0x1] %vm1582, %v1580
  // Predicated region
  $region42: #{mha_sad_pallas.1} parent=0 // pred_check
    _
  $region43: #{mha_sad_pallas.1} parent=0 // pred_check_branch
    %1585 = sbr.rel (0) target = $region45
  $region44: #{mha_sad_pallas.1} parent=0 // pred_region
    _
  $region45: #{mha_sad_pallas.1} parent=0 // pred_fallthru
    _
  // Predicated region
  $region46: #{mha_sad_pallas.1} parent=0 // pred_check
    _
  $region47: #{mha_sad_pallas.1} parent=0 // pred_check_branch
    %1587 = sbr.rel (0) target = $region49
  $region48: #{mha_sad_pallas.1} parent=0 // pred_region
    _
  $region49: #{mha_sad_pallas.1} parent=0 // pred_fallthru
    _

</llo_original>
